<compile_context>
chip_gen: v6e
topology: v6e:2x2x1
jax: 0.10.0
libtpu: 0.0.40
codegen_flags: <defaults>
</compile_context>

<pallas_src>
import functools

import numpy as np
import jax
import jax.numpy as jnp
from jax.experimental import pallas as pl
from jax.experimental.pallas import tpu as pltpu

VMEM = pl.BlockSpec(memory_space=pltpu.MemorySpace.VMEM)


# ------------------------------ small helpers ------------------------------ #

def _round_up(x, m):
    return ((x + m - 1) // m) * m


def _pad2d_np(x, rows, cols):
    out = np.zeros((rows, cols), np.float32)
    out[:x.shape[0], :x.shape[1]] = x
    return out


def _pad2d(x, rows, cols):
    return jnp.pad(x, ((0, rows - x.shape[0]), (0, cols - x.shape[1])))


def _gate_block_pad(w, h, h_pad):
    """(4h, K) -> (4*h_pad, K): gate g's rows land at [g*h_pad, g*h_pad+h)."""
    out = np.zeros((4 * h_pad, w.shape[1]), np.float32)
    for g in range(4):
        out[g * h_pad:g * h_pad + h] = w[g * h:(g + 1) * h]
    return out


def _gate_bias_pad(b, h, h_pad):
    out = np.zeros((1, 4 * h_pad), np.float32)
    for g in range(4):
        out[0, g * h_pad:g * h_pad + h] = b[g * h:(g + 1) * h]
    return out


# ----------------------------- Pallas kernels ------------------------------ #

def _fused_step_kernel(n_ref, t_ref, h0_ref, c0_ref, hp_ref, hd0_ref, cd0_ref,
                       win_n_ref, win_t_ref, whh_ref, b_ref,
                       wdn_ref, wdh_ref, wdhh_ref, bd_ref,
                       woh_ref, wop_ref, bo_ref, wcomb_ref,
                       h_out, c_out, out_out, hd_out, cd_out, logits_out,
                       *, h_pad, ed_pad, cdt):
    """Fused per-token step: main LSTM cell, w_out+tanh, dyn LSTM cell,
    combined (static-vocab + uniform-dyn) logits.  Everything stays in VMEM."""
    f32 = jnp.float32
    n_x = n_ref[...].astype(cdt)
    t_x = t_ref[...].astype(cdt)
    h0 = h0_ref[...].astype(cdt)

    # --- main LSTM cell; K-split (no concat), gate blocks lane-aligned ---
    gates = (jnp.dot(n_x, win_n_ref[...], preferred_element_type=f32)
             + jnp.dot(t_x, win_t_ref[...], preferred_element_type=f32)
             + jnp.dot(h0, whh_ref[...], preferred_element_type=f32)
             + b_ref[...])
    i = jax.nn.sigmoid(gates[:, 0 * h_pad:1 * h_pad])
    f = jax.nn.sigmoid(gates[:, 1 * h_pad:2 * h_pad])
    g = jnp.tanh(gates[:, 2 * h_pad:3 * h_pad])
    o = jax.nn.sigmoid(gates[:, 3 * h_pad:4 * h_pad])
    c_new = f * c0_ref[...] + i * g
    h_new = o * jnp.tanh(c_new)
    h_out[...] = h_new
    c_out[...] = c_new

    # --- out = tanh(w_out([h_new, h_parent]))  (K-split) ---
    out = jnp.tanh(jnp.dot(h_new.astype(cdt), woh_ref[...], preferred_element_type=f32)
                   + jnp.dot(hp_ref[...].astype(cdt), wop_ref[...], preferred_element_type=f32)
                   + bo_ref[...])
    out_out[...] = out

    # --- dynamic LSTM cell over all rows ([n_emb, h_prev] K-split);
    #     rows for non-dynamic tokens are ignored by the host bookkeeping ---
    gd = (jnp.dot(n_x, wdn_ref[...], preferred_element_type=f32)
          + jnp.dot(h0, wdh_ref[...], preferred_element_type=f32)
          + jnp.dot(hd0_ref[...].astype(cdt), wdhh_ref[...], preferred_element_type=f32)
          + bd_ref[...])
    di = jax.nn.sigmoid(gd[:, 0 * ed_pad:1 * ed_pad])
    df = jax.nn.sigmoid(gd[:, 1 * ed_pad:2 * ed_pad])
    dg = jnp.tanh(gd[:, 2 * ed_pad:3 * ed_pad])
    do = jax.nn.sigmoid(gd[:, 3 * ed_pad:4 * ed_pad])
    cd_new = df * cd0_ref[...] + di * dg
    hd_new = do * jnp.tanh(cd_new)
    hd_out[...] = hd_new
    cd_out[...] = cd_new

    # --- combined logits: out @ [embeddingT ; dyn_inits_h].T  (lane-dense) ---
    logits_out[...] = jnp.dot(out.astype(cdt), wcomb_ref[...], preferred_element_type=f32)


def _matmul_kernel(a_ref, b_ref, o_ref, *, cdt):
    o_ref[...] = jnp.dot(a_ref[...].astype(cdt), b_ref[...].astype(cdt),
                         preferred_element_type=jnp.float32)


def _clamp_logsoftmax_kernel(x_ref, o_ref, *, valid):
    x = jnp.clip(x_ref[...], -15.0, 15.0)
    cols = jax.lax.broadcasted_iota(jnp.int32, x.shape, 1)
    x = jnp.where(cols < valid, x, -1e30)          # mask lane padding
    m = jnp.max(x, axis=-1, keepdims=True)
    s = jnp.sum(jnp.exp(x - m), axis=-1, keepdims=True)
    o_ref[...] = x - m - jnp.log(s)


# ------------------------- jitted device-step builders ---------------------- #

def _make_step_fn(en_pad, et_pad, h_pad, ed_pad, vs1_pad, cdt):
    kern = functools.partial(_fused_step_kernel, h_pad=h_pad, ed_pad=ed_pad, cdt=cdt)

    def step(n_ids, t_emb, h0, c0, h_parent, hd0, cd0, params):
        f32 = jnp.float32
        b = n_ids.shape[0]
        b_pad = _round_up(b, 8)
        n_emb = jnp.take(params['embN'], n_ids, axis=0).astype(f32)
        n_p = _pad2d(n_emb, b_pad, en_pad)
        t_p = _pad2d(t_emb.astype(f32), b_pad, et_pad)
        h0_p = _pad2d(h0.astype(f32), b_pad, h_pad)
        c0_p = _pad2d(c0.astype(f32), b_pad, h_pad)
        hp_p = _pad2d(h_parent.astype(f32), b_pad, h_pad)
        hd0_p = _pad2d(hd0.astype(f32), b_pad, ed_pad)
        cd0_p = _pad2d(cd0.astype(f32), b_pad, ed_pad)
        out_shapes = (
            jax.ShapeDtypeStruct((b_pad, h_pad), f32),    # h_new
            jax.ShapeDtypeStruct((b_pad, h_pad), f32),    # c_new
            jax.ShapeDtypeStruct((b_pad, et_pad), f32),   # out
            jax.ShapeDtypeStruct((b_pad, ed_pad), f32),   # hd_new
            jax.ShapeDtypeStruct((b_pad, ed_pad), f32),   # cd_new
            jax.ShapeDtypeStruct((b_pad, vs1_pad), f32),  # static + uni logits
        )
        return pl.pallas_call(
            kern,
            out_shape=out_shapes,
            in_specs=[VMEM] * 19,
            out_specs=(VMEM,) * 6,
        )(n_p, t_p, h0_p, c0_p, hp_p, hd0_p, cd0_p,
          params['win_n'], params['win_t'], params['whh'], params['b'],
          params['wdn'], params['wdh'], params['wdhh'], params['bd'],
          params['woh'], params['wop'], params['bo'], params['wcomb'])

    return jax.jit(step)


def _make_dyn_logits_fn(vs, vout, cdt):
    v_pad = _round_up(vout, 128)
    clamp_kern = functools.partial(_clamp_logsoftmax_kernel, valid=vout)
    mm_kern = functools.partial(_matmul_kernel, cdt=cdt)
    # TODO(synk): for production-size vocab / embedding store, tile this matmul
    # with a grid over vocab lanes (and dimension_semantics=("parallel",...))
    # instead of whole-array VMEM blocks.

    def fn(out_pad, logits_comb, store_t, lookup, gather_idx):
        f32 = jnp.float32
        b = lookup.shape[0]
        b_pad = out_pad.shape[0]
        ns_pad = store_t.shape[1]
        # per-store-entry logits: lane-dense (B_pad, Nstore_pad) matmul
        s = pl.pallas_call(
            mm_kern,
            out_shape=jax.ShapeDtypeStruct((b_pad, ns_pad), f32),
            in_specs=[VMEM, VMEM], out_specs=VMEM,
        )(out_pad, store_t)[:b]
        static_logits = logits_comb[:b, :vs]
        uni = logits_comb[:b, vs:vs + 1]                       # out . dyn_inits_h
        dyn = jnp.take_along_axis(s, jnp.maximum(lookup, 0), axis=1)
        dyn = jnp.where(lookup >= 0, dyn, uni)
        full = jnp.concatenate([static_logits, dyn, jnp.zeros((b, 1), f32)], axis=1)
        w_pre = jnp.take(full, gather_idx, axis=1)             # scatter -> fixed permutation
        w_pre = _pad2d(w_pre, b_pad, v_pad)
        w_t = pl.pallas_call(
            clamp_kern,
            out_shape=jax.ShapeDtypeStruct((b_pad, v_pad), f32),
            in_specs=[VMEM], out_specs=VMEM,
        )(w_pre)
        return w_t[:b, :vout]

    return jax.jit(fn)


def _make_static_logits_fn(vs):
    v_pad = max(_round_up(vs, 128), 128)
    clamp_kern = functools.partial(_clamp_logsoftmax_kernel, valid=vs)

    def fn(logits_comb):
        b_pad = logits_comb.shape[0]
        w_pre = jnp.zeros((b_pad, v_pad), jnp.float32).at[:, :vs].set(logits_comb[:, :vs])
        return pl.pallas_call(
            clamp_kern,
            out_shape=jax.ShapeDtypeStruct((b_pad, v_pad), jnp.float32),
            in_specs=[VMEM], out_specs=VMEM,
        )(w_pre)

    return jax.jit(fn)


# ----------------------------- Module wrapper ------------------------------ #

class DecoderSimpleAnPallas:
    def __init__(self, anonym_type, hidden_size, vocab_sizeT_in, vocab_sizeT_out,
                 vocab_sizeN, embedding_sizeN, embedding_sizeT, dropout,
                 static_x_ids=(), attn=False, pointer=False,
                 embedding_sizeT_dyn=None, key=None, compute_dtype=jnp.float32):
        # TODO(synk): attention / pointer branches and embedded_dropout RNG are not
        # implemented; this covers attn=False, pointer=False, dropout=0 exactly.
        assert not attn and not pointer
        assert dropout == 0.0
        assert embedding_sizeT_dyn is None          # emb_transform == identity
        assert anonym_type in ('pure_uni', 'pure_zeros')

        self.attn = attn
        self.pointer = pointer
        self.hidden_size = hidden_size
        self.embedding_sizeN = embedding_sizeN
        self.embedding_sizeT = embedding_sizeT
        self.embedding_sizeT_dyn = embedding_sizeT
        self.vocab_sizeT_in = vocab_sizeT_in
        self.vocab_sizeT_out = vocab_sizeT_out

        self.static_x_ids = np.array(sorted(static_x_ids), np.int64)
        self.dynamic_x_ids = np.array(
            sorted(set(range(vocab_sizeT_in)) - set(static_x_ids)), np.int64)
        self.vocab_size_static = len(self.static_x_ids)
        self.vocab_size_dyn = vocab_sizeT_in - len(self.static_x_ids)
        self.static2dense = np.zeros(int(self.static_x_ids.max()) + 1, np.int64)
        self.static2dense[self.static_x_ids] = np.arange(len(self.static_x_ids))
        self.dynamic2dense = np.zeros(int(self.dynamic_x_ids.max()) + 1, np.int64)
        self.dynamic2dense[self.dynamic_x_ids] = np.arange(len(self.dynamic_x_ids))

        self.anonym_type = anonym_type
        self.h_init_type = 'zeros' if anonym_type in {'mixed_zeros', 'pure_zeros'} else 'uni'
        self.h_type = 'pure'

        En, Et, H = embedding_sizeN, embedding_sizeT, hidden_size
        Ed = self.embedding_sizeT_dyn
        Vs, Vd = self.vocab_size_static, self.vocab_size_dyn

        # ---- deterministic parameter init (host NumPy copies for host gathers) ----
        if key is None:
            key = jax.random.PRNGKey(0)
        ks = jax.random.split(key, 14)

        def uni(k, shape, s):
            return np.asarray(jax.random.uniform(k, shape, jnp.float32, -s, s))

        self.embeddingN_w = uni(ks[0], (vocab_sizeN, En), 0.5)
        self.embeddingT_w = uni(ks[1], (Vs, Et), 0.5)

        sH = 1.0 / np.sqrt(H)
        self.lstm_w_ih = uni(ks[2], (4 * H, En + Et), sH)
        self.lstm_w_hh = uni(ks[3], (4 * H, H), sH)
        self.lstm_b_ih = uni(ks[4], (4 * H,), sH)
        self.lstm_b_hh = uni(ks[5], (4 * H,), sH)

        sD = 1.0 / np.sqrt(Ed)
        self.lstm_dyn_w_ih = uni(ks[6], (4 * Ed, En + H), sD)
        self.lstm_dyn_w_hh = uni(ks[7], (4 * Ed, Ed), sD)
        self.lstm_dyn_b_ih = uni(ks[8], (4 * Ed,), sD)
        self.lstm_dyn_b_hh = uni(ks[9], (4 * Ed,), sD)

        sO = 1.0 / np.sqrt(2 * H)
        self.w_out_w = uni(ks[10], (Et, 2 * H), sO)   # nn.Linear(2H, Et)
        self.w_out_b = uni(ks[11], (Et,), sO)

        if self.h_init_type == 'uni':
            self.dyn_inits_h = uni(ks[12], (1, Ed), 0.05)
            self.dyn_inits_c = uni(ks[13], (1, Ed), 0.05)
        else:
            self.dyn_inits_h = np.zeros((1, Ed), np.float32)
            self.dyn_inits_c = np.zeros((1, Ed), np.float32)
        # (w_global exists in the PyTorch module but is never used in forward.)

        # ---- padded / pre-transposed device-resident weights (built once) ----
        self._en_pad = _round_up(En, 128)
        self._et_pad = _round_up(Et, 128)
        self._h_pad = _round_up(H, 128)
        self._ed_pad = _round_up(Ed, 128)
        self._vs1_pad = _round_up(Vs + 1, 128)

        w_ih_gp = _gate_block_pad(self.lstm_w_ih, H, self._h_pad)
        win_n = _pad2d_np(w_ih_gp[:, :En].T, self._en_pad, 4 * self._h_pad)
        win_t = _pad2d_np(w_ih_gp[:, En:En + Et].T, self._et_pad, 4 * self._h_pad)
        whh = _pad2d_np(_gate_block_pad(self.lstm_w_hh, H, self._h_pad).T,
                        self._h_pad, 4 * self._h_pad)
        bmain = _gate_bias_pad(self.lstm_b_ih + self.lstm_b_hh, H, self._h_pad)

        wd_gp = _gate_block_pad(self.lstm_dyn_w_ih, Ed, self._ed_pad)
        wdn = _pad2d_np(wd_gp[:, :En].T, self._en_pad, 4 * self._ed_pad)
        wdh = _pad2d_np(wd_gp[:, En:En + H].T, self._h_pad, 4 * self._ed_pad)
        wdhh = _pad2d_np(_gate_block_pad(self.lstm_dyn_w_hh, Ed, self._ed_pad).T,
                         self._ed_pad, 4 * self._ed_pad)
        bdyn = _gate_bias_pad(self.lstm_dyn_b_ih + self.lstm_dyn_b_hh, Ed, self._ed_pad)

        woh = _pad2d_np(self.w_out_w[:, :H].T, self._h_pad, self._et_pad)
        wop = _pad2d_np(self.w_out_w[:, H:2 * H].T, self._h_pad, self._et_pad)
        bo = _pad2d_np(self.w_out_b.reshape(1, Et), 1, self._et_pad)

        wcomb = _pad2d_np(np.concatenate([self.embeddingT_w, self.dyn_inits_h], axis=0).T,
                          self._et_pad, self._vs1_pad)

        mm = lambda a: jnp.asarray(a, compute_dtype)     # matmul operand dtype
        f32 = lambda a: jnp.asarray(a, jnp.float32)
        self._params = {
            'embN': f32(self.embeddingN_w),
            'win_n': mm(win_n), 'win_t': mm(win_t), 'whh': mm(whh), 'b': f32(bmain),
            'wdn': mm(wdn), 'wdh': mm(wdh), 'wdhh': mm(wdhh), 'bd': f32(bdyn),
            'woh': mm(woh), 'wop': mm(wop), 'bo': f32(bo),
            'wcomb': mm(wcomb),
        }

        # fixed column permutation: [static dense | dyn dense | zero col] -> vocab ids
        gidx = np.full(vocab_sizeT_out, Vs + Vd, np.int32)
        if Vs > 0:
            gidx[self.static_x_ids] = np.arange(Vs, dtype=np.int32)
        if Vd > 0:
            gidx[self.dynamic_x_ids] = Vs + np.arange(Vd, dtype=np.int32)
        self._gather_idx = jnp.asarray(gidx)

        self._step_fn = _make_step_fn(self._en_pad, self._et_pad, self._h_pad,
                                      self._ed_pad, self._vs1_pad, compute_dtype)
        self._dyn_logits_fn = _make_dyn_logits_fn(Vs, vocab_sizeT_out, compute_dtype)
        self._static_logits_fn = _make_static_logits_fn(max(Vs, 1))

    # ------------------------------------------------------------------ #
    def forward(self, inputs, hc, enc_out, mask, h_parent, dyn_embs):
        n_ids, t_ids = inputs
        n_ids = np.asarray(n_ids)
        t_ids = np.asarray(t_ids)
        lookup_table = np.array(dyn_embs[0])
        de_h = np.asarray(dyn_embs[1], np.float32)
        de_c = np.asarray(dyn_embs[2], np.float32)
        B = n_ids.shape[0]
        H, Et, Ed = self.hidden_size, self.embedding_sizeT, self.embedding_sizeT_dyn

        h_full = jnp.asarray(hc[0], jnp.float32)
        c_full = jnp.asarray(hc[1], jnp.float32)
        h0, c0 = h_full[0], c_full[0]
        h_parent = jnp.asarray(h_parent, jnp.float32)

        # ---- data-dependent token routing (host; variable-count bookkeeping) ----
        # TODO(synk): lookup-table / store growth has data-dependent shapes, so it
        # stays in NumPy; only fixed-shape math runs in the Pallas kernels.
        is_static = np.isin(t_ids, self.static_x_ids)
        is_dynamic = ~is_static
        any_dynamic = bool(is_dynamic.sum() > 0)
        loktab_sel = lookup_table[np.arange(B)[is_dynamic],
                                  self.dynamic2dense[t_ids[is_dynamic]]]
        is_dynamic_new = np.zeros(B, bool)
        is_dynamic_new[is_dynamic] = loktab_sel == -1
        is_dynamic_update = np.zeros(B, bool)
        is_dynamic_update[is_dynamic] = loktab_sel != -1
        inds_update = loktab_sel[loktab_sel != -1]

        # host assembly of T-embedding input and dyn-LSTM initial state (full batch)
        t_emb = np.zeros((B, Et), np.float32)
        hd0 = np.zeros((B, Ed), np.float32)
        cd0 = np.zeros((B, Ed), np.float32)
        if is_static.sum() > 0:
            t_emb[is_static] = self.embeddingT_w[self.static2dense[t_ids[is_static]]]
        if is_dynamic_update.sum() > 0:
            rows_h = de_h[inds_update][:, 0]
            rows_c = de_c[inds_update][:, 0]
            t_emb[is_dynamic_update] = rows_h          # emb_transform == identity
            hd0[is_dynamic_update] = rows_h
            cd0[is_dynamic_update] = rows_c
        if is_dynamic_new.sum() > 0:                    # h_type == 'pure'
            t_emb[is_dynamic_new] = self.dyn_inits_h
            hd0[is_dynamic_new] = self.dyn_inits_h
            cd0[is_dynamic_new] = self.dyn_inits_c

        # ---- fused device step (one pallas_call) ----
        (h_new_p, c_new_p, out_p, hd_new_p, cd_new_p, logits_comb) = self._step_fn(
            jnp.asarray(n_ids, jnp.int32), t_emb, h0, c0, h_parent, hd0, cd0, self._params)

        h_hid = h_new_p[:B, :H][None]
        c_hid = c_new_p[:B, :H][None]

        # ---- dynamic-embedding store update (host; growing shapes) ----
        if any_dynamic:
            hd_np = np.asarray(hd_new_p)[:B, :Ed]
            cd_np = np.asarray(cd_new_p)[:B, :Ed]
            de_h = de_h.copy()
            de_c = de_c.copy()
            upd_rows = np.where(is_dynamic_update)[0]
            if len(upd_rows) > 0:
                de_h[inds_update] = hd_np[upd_rows][:, None, :]
                de_c[inds_update] = cd_np[upd_rows][:, None, :]
            new_rows = np.where(is_dynamic_new)[0]
            n_old = de_h.shape[0]
            n_new = len(new_rows)
            lookup_table = lookup_table.copy()
            if n_new > 0:
                lookup_table[new_rows, self.dynamic2dense[t_ids[new_rows]]] = \
                    np.arange(n_old, n_old + n_new)
                de_h = np.concatenate([de_h, hd_np[new_rows][:, None, :]], axis=0)
                de_c = np.concatenate([de_c, cd_np[new_rows][:, None, :]], axis=0)

        # ---- vocabulary logits + clamp + log_softmax (device) ----
        if self.vocab_sizeT_out > self.vocab_size_static:
            ns = de_h.shape[0]
            ns_pad = _round_up(max(ns, 1), 128)         # bucket to limit recompiles
            store_t = np.zeros((self._et_pad, ns_pad), np.float32)
            if ns > 0:
                store_t[:Ed, :ns] = de_h[:, -1].T
            w_t = self._dyn_logits_fn(out_p, logits_comb, store_t,
                                      lookup_table.astype(np.int32), self._gather_idx)
        else:
            w_t = self._static_logits_fn(logits_comb)[:B, :self.vocab_size_static]

        dyn_embs = [lookup_table, de_h, de_c]
        return w_t, (h_hid, c_hid), dyn_embs


# --------------------------------- demo ------------------------------------ #

if __name__ == "__main__":
    B = 4
    hidden_size = 32
    vocab_sizeN = 10
    embedding_sizeN = 16
    embedding_sizeT = 16
    vocab_sizeT_in = 12
    vocab_sizeT_out = 12
    static_x_ids = [0, 1, 2, 3, 4, 5]
    S = 8  # enc_out seq len (unused when attn=False)

    model = DecoderSimpleAnPallas(
        'pure_uni', hidden_size, vocab_sizeT_in, vocab_sizeT_out, vocab_sizeN,
        embedding_sizeN, embedding_sizeT, dropout=0.0, static_x_ids=static_x_ids,
        attn=False, pointer=False, key=jax.random.PRNGKey(0))

    key = jax.random.PRNGKey(0)
    ks = jax.random.split(key, 8)
    n_input = np.asarray(jax.random.randint(ks[0], (B,), 0, vocab_sizeN))
    # mix of static tokens (1, 3) and dynamic tokens (7 -> existing entry, 9 -> new entry)
    t_input = np.array([1, 7, 9, 3], np.int64)

    h0 = np.asarray(jax.random.uniform(ks[1], (1, B, hidden_size), jnp.float32, -0.1, 0.1))
    c0 = np.asarray(jax.random.uniform(ks[2], (1, B, hidden_size), jnp.float32, -0.1, 0.1))
    h_parent = np.asarray(jax.random.uniform(ks[3], (B, hidden_size), jnp.float32, -0.1, 0.1))
    enc_out = np.zeros((B, S, hidden_size), np.float32)
    mask = np.zeros((B, S), bool)

    lookup_table = -np.ones((B, model.vocab_size_dyn), np.int64)
    lookup_table[1, model.dynamic2dense[7]] = 0       # batch 1 already knows dyn token 7
    de_h = np.asarray(jax.random.uniform(ks[4], (2, 1, model.embedding_sizeT_dyn),
                                         jnp.float32, -0.1, 0.1))
    de_c = np.asarray(jax.random.uniform(ks[5], (2, 1, model.embedding_sizeT_dyn),
                                         jnp.float32, -0.1, 0.1))

    w_t, (h_hid, c_hid), dyn_embs = model.forward(
        (n_input, t_input), (h0, c0), enc_out, mask, h_parent,
        [lookup_table, de_h, de_c])

    jax.block_until_ready(w_t)
    jax.block_until_ready(h_hid)
    jax.block_until_ready(c_hid)
    assert w_t.shape == (B, vocab_sizeT_out)
    assert dyn_embs[1].shape[0] == de_h.shape[0] + 1   # one new dynamic embedding appended
    print("KERNEL_OK")
</pallas_src>

<mosaic_0001>
module attributes {stable_mosaic.version = 11 : i64} {
  func.func @_fused_step_kernel(%arg0: memref<8x128xf32, #tpu.memory_space<vmem>>, %arg1: memref<8x128xf32, #tpu.memory_space<vmem>>, %arg2: memref<8x128xf32, #tpu.memory_space<vmem>>, %arg3: memref<8x128xf32, #tpu.memory_space<vmem>>, %arg4: memref<8x128xf32, #tpu.memory_space<vmem>>, %arg5: memref<8x128xf32, #tpu.memory_space<vmem>>, %arg6: memref<8x128xf32, #tpu.memory_space<vmem>>, %arg7: memref<128x512xf32, #tpu.memory_space<vmem>>, %arg8: memref<128x512xf32, #tpu.memory_space<vmem>>, %arg9: memref<128x512xf32, #tpu.memory_space<vmem>>, %arg10: memref<1x512xf32, #tpu.memory_space<vmem>>, %arg11: memref<128x512xf32, #tpu.memory_space<vmem>>, %arg12: memref<128x512xf32, #tpu.memory_space<vmem>>, %arg13: memref<128x512xf32, #tpu.memory_space<vmem>>, %arg14: memref<1x512xf32, #tpu.memory_space<vmem>>, %arg15: memref<128x128xf32, #tpu.memory_space<vmem>>, %arg16: memref<128x128xf32, #tpu.memory_space<vmem>>, %arg17: memref<1x128xf32, #tpu.memory_space<vmem>>, %arg18: memref<128x128xf32, #tpu.memory_space<vmem>>, %arg19: memref<8x128xf32, #tpu.memory_space<vmem>>, %arg20: memref<8x128xf32, #tpu.memory_space<vmem>>, %arg21: memref<8x128xf32, #tpu.memory_space<vmem>>, %arg22: memref<8x128xf32, #tpu.memory_space<vmem>>, %arg23: memref<8x128xf32, #tpu.memory_space<vmem>>, %arg24: memref<8x128xf32, #tpu.memory_space<vmem>>) attributes {dimension_semantics = [], scalar_prefetch = 0 : i64, scratch_operands = 0 : i64, tpu.core_type = #tpu.core_type<tc>} {
    %c0 = arith.constant 0 : index
    %c0_0 = arith.constant 0 : index
    %0 = vector.load %arg0[%c0, %c0_0] : memref<8x128xf32, #tpu.memory_space<vmem>>, vector<8x128xf32>
    %c0_1 = arith.constant 0 : index
    %c0_2 = arith.constant 0 : index
    %1 = vector.load %arg1[%c0_1, %c0_2] : memref<8x128xf32, #tpu.memory_space<vmem>>, vector<8x128xf32>
    %c0_3 = arith.constant 0 : index
    %c0_4 = arith.constant 0 : index
    %2 = vector.load %arg2[%c0_3, %c0_4] : memref<8x128xf32, #tpu.memory_space<vmem>>, vector<8x128xf32>
    %c0_5 = arith.constant 0 : index
    %c0_6 = arith.constant 0 : index
    %3 = vector.load %arg7[%c0_5, %c0_6] : memref<128x512xf32, #tpu.memory_space<vmem>>, vector<128x512xf32>
    %cst = arith.constant dense<0.000000e+00> : vector<8x512xf32>
    %4 = tpu.matmul %0, %3, %cst {dimension_numbers = #tpu.dot_dimension_numbers<[1], [0], [0], [1], [0, 0, 1, 1], [], []>} : vector<8x128xf32>, vector<128x512xf32>, vector<8x512xf32> -> vector<8x512xf32>
    %c0_7 = arith.constant 0 : index
    %c0_8 = arith.constant 0 : index
    %5 = vector.load %arg8[%c0_7, %c0_8] : memref<128x512xf32, #tpu.memory_space<vmem>>, vector<128x512xf32>
    %cst_9 = arith.constant dense<0.000000e+00> : vector<8x512xf32>
    %6 = tpu.matmul %1, %5, %cst_9 {dimension_numbers = #tpu.dot_dimension_numbers<[1], [0], [0], [1], [0, 0, 1, 1], [], []>} : vector<8x128xf32>, vector<128x512xf32>, vector<8x512xf32> -> vector<8x512xf32>
    %7 = arith.addf %4, %6 : vector<8x512xf32>
    %c0_10 = arith.constant 0 : index
    %c0_11 = arith.constant 0 : index
    %8 = vector.load %arg9[%c0_10, %c0_11] : memref<128x512xf32, #tpu.memory_space<vmem>>, vector<128x512xf32>
    %cst_12 = arith.constant dense<0.000000e+00> : vector<8x512xf32>
    %9 = tpu.matmul %2, %8, %cst_12 {dimension_numbers = #tpu.dot_dimension_numbers<[1], [0], [0], [1], [0, 0, 1, 1], [], []>} : vector<8x128xf32>, vector<128x512xf32>, vector<8x512xf32> -> vector<8x512xf32>
    %10 = arith.addf %7, %9 : vector<8x512xf32>
    %c0_13 = arith.constant 0 : index
    %c0_14 = arith.constant 0 : index
    %11 = vector.load %arg10[%c0_13, %c0_14] : memref<1x512xf32, #tpu.memory_space<vmem>>, vector<1x512xf32>
    %12 = vector.broadcast %11 : vector<1x512xf32> to vector<8x512xf32>
    %13 = arith.addf %10, %12 : vector<8x512xf32>
    %14 = vector.extract_strided_slice %13 {offsets = [0, 0], sizes = [8, 128], strides = [1, 1]} : vector<8x512xf32> to vector<8x128xf32>
    %15 = arith.negf %14 : vector<8x128xf32>
    %16 = math.exp %15 : vector<8x128xf32>
    %cst_15 = arith.constant 1.000000e+00 : f32
    %17 = vector.broadcast %cst_15 : f32 to vector<8x128xf32>
    %18 = arith.addf %17, %16 : vector<8x128xf32>
    %19 = arith.divf %17, %18 : vector<8x128xf32>
    %20 = vector.extract_strided_slice %13 {offsets = [0, 128], sizes = [8, 128], strides = [1, 1]} : vector<8x512xf32> to vector<8x128xf32>
    %21 = arith.negf %20 : vector<8x128xf32>
    %22 = math.exp %21 : vector<8x128xf32>
    %cst_16 = arith.constant 1.000000e+00 : f32
    %23 = vector.broadcast %cst_16 : f32 to vector<8x128xf32>
    %24 = arith.addf %23, %22 : vector<8x128xf32>
    %25 = arith.divf %23, %24 : vector<8x128xf32>
    %26 = vector.extract_strided_slice %13 {offsets = [0, 256], sizes = [8, 128], strides = [1, 1]} : vector<8x512xf32> to vector<8x128xf32>
    %27 = math.tanh %26 : vector<8x128xf32>
    %28 = vector.extract_strided_slice %13 {offsets = [0, 384], sizes = [8, 128], strides = [1, 1]} : vector<8x512xf32> to vector<8x128xf32>
    %29 = arith.negf %28 : vector<8x128xf32>
    %30 = math.exp %29 : vector<8x128xf32>
    %cst_17 = arith.constant 1.000000e+00 : f32
    %31 = vector.broadcast %cst_17 : f32 to vector<8x128xf32>
    %32 = arith.addf %31, %30 : vector<8x128xf32>
    %33 = arith.divf %31, %32 : vector<8x128xf32>
    %c0_18 = arith.constant 0 : index
    %c0_19 = arith.constant 0 : index
    %34 = vector.load %arg3[%c0_18, %c0_19] : memref<8x128xf32, #tpu.memory_space<vmem>>, vector<8x128xf32>
    %35 = arith.mulf %25, %34 : vector<8x128xf32>
    %36 = arith.mulf %19, %27 : vector<8x128xf32>
    %37 = arith.addf %35, %36 : vector<8x128xf32>
    %38 = math.tanh %37 : vector<8x128xf32>
    %39 = arith.mulf %33, %38 : vector<8x128xf32>
    %c0_20 = arith.constant 0 : index
    %c0_21 = arith.constant 0 : index
    %40 = vector.load %arg19[%c0_20, %c0_21] : memref<8x128xf32, #tpu.memory_space<vmem>>, vector<8x128xf32>
    tpu.vector_store %arg19[%c0_20, %c0_21], %39 {strides = array<i32>} : memref<8x128xf32, #tpu.memory_space<vmem>>, vector<8x128xf32>,
    %c0_22 = arith.constant 0 : index
    %c0_23 = arith.constant 0 : index
    %41 = vector.load %arg20[%c0_22, %c0_23] : memref<8x128xf32, #tpu.memory_space<vmem>>, vector<8x128xf32>
    tpu.vector_store %arg20[%c0_22, %c0_23], %37 {strides = array<i32>} : memref<8x128xf32, #tpu.memory_space<vmem>>, vector<8x128xf32>,
    %c0_24 = arith.constant 0 : index
    %c0_25 = arith.constant 0 : index
    %42 = vector.load %arg15[%c0_24, %c0_25] : memref<128x128xf32, #tpu.memory_space<vmem>>, vector<128x128xf32>
    %cst_26 = arith.constant dense<0.000000e+00> : vector<8x128xf32>
    %43 = tpu.matmul %39, %42, %cst_26 {dimension_numbers = #tpu.dot_dimension_numbers<[1], [0], [0], [1], [0, 0, 1, 1], [], []>} : vector<8x128xf32>, vector<128x128xf32>, vector<8x128xf32> -> vector<8x128xf32>
    %c0_27 = arith.constant 0 : index
    %c0_28 = arith.constant 0 : index
    %44 = vector.load %arg4[%c0_27, %c0_28] : memref<8x128xf32, #tpu.memory_space<vmem>>, vector<8x128xf32>
    %c0_29 = arith.constant 0 : index
    %c0_30 = arith.constant 0 : index
    %45 = vector.load %arg16[%c0_29, %c0_30] : memref<128x128xf32, #tpu.memory_space<vmem>>, vector<128x128xf32>
    %cst_31 = arith.constant dense<0.000000e+00> : vector<8x128xf32>
    %46 = tpu.matmul %44, %45, %cst_31 {dimension_numbers = #tpu.dot_dimension_numbers<[1], [0], [0], [1], [0, 0, 1, 1], [], []>} : vector<8x128xf32>, vector<128x128xf32>, vector<8x128xf32> -> vector<8x128xf32>
    %47 = arith.addf %43, %46 : vector<8x128xf32>
    %c0_32 = arith.constant 0 : index
    %c0_33 = arith.constant 0 : index
    %48 = vector.load %arg17[%c0_32, %c0_33] : memref<1x128xf32, #tpu.memory_space<vmem>>, vector<1x128xf32>
    %49 = vector.broadcast %48 : vector<1x128xf32> to vector<8x128xf32>
    %50 = arith.addf %47, %49 : vector<8x128xf32>
    %51 = math.tanh %50 : vector<8x128xf32>
    %c0_34 = arith.constant 0 : index
    %c0_35 = arith.constant 0 : index
    %52 = vector.load %arg21[%c0_34, %c0_35] : memref<8x128xf32, #tpu.memory_space<vmem>>, vector<8x128xf32>
    tpu.vector_store %arg21[%c0_34, %c0_35], %51 {strides = array<i32>} : memref<8x128xf32, #tpu.memory_space<vmem>>, vector<8x128xf32>,
    %c0_36 = arith.constant 0 : index
    %c0_37 = arith.constant 0 : index
    %53 = vector.load %arg11[%c0_36, %c0_37] : memref<128x512xf32, #tpu.memory_space<vmem>>, vector<128x512xf32>
    %cst_38 = arith.constant dense<0.000000e+00> : vector<8x512xf32>
    %54 = tpu.matmul %0, %53, %cst_38 {dimension_numbers = #tpu.dot_dimension_numbers<[1], [0], [0], [1], [0, 0, 1, 1], [], []>} : vector<8x128xf32>, vector<128x512xf32>, vector<8x512xf32> -> vector<8x512xf32>
    %c0_39 = arith.constant 0 : index
    %c0_40 = arith.constant 0 : index
    %55 = vector.load %arg12[%c0_39, %c0_40] : memref<128x512xf32, #tpu.memory_space<vmem>>, vector<128x512xf32>
    %cst_41 = arith.constant dense<0.000000e+00> : vector<8x512xf32>
    %56 = tpu.matmul %2, %55, %cst_41 {dimension_numbers = #tpu.dot_dimension_numbers<[1], [0], [0], [1], [0, 0, 1, 1], [], []>} : vector<8x128xf32>, vector<128x512xf32>, vector<8x512xf32> -> vector<8x512xf32>
    %57 = arith.addf %54, %56 : vector<8x512xf32>
    %c0_42 = arith.constant 0 : index
    %c0_43 = arith.constant 0 : index
    %58 = vector.load %arg5[%c0_42, %c0_43] : memref<8x128xf32, #tpu.memory_space<vmem>>, vector<8x128xf32>
    %c0_44 = arith.constant 0 : index
    %c0_45 = arith.constant 0 : index
    %59 = vector.load %arg13[%c0_44, %c0_45] : memref<128x512xf32, #tpu.memory_space<vmem>>, vector<128x512xf32>
    %cst_46 = arith.constant dense<0.000000e+00> : vector<8x512xf32>
    %60 = tpu.matmul %58, %59, %cst_46 {dimension_numbers = #tpu.dot_dimension_numbers<[1], [0], [0], [1], [0, 0, 1, 1], [], []>} : vector<8x128xf32>, vector<128x512xf32>, vector<8x512xf32> -> vector<8x512xf32>
    %61 = arith.addf %57, %60 : vector<8x512xf32>
    %c0_47 = arith.constant 0 : index
    %c0_48 = arith.constant 0 : index
    %62 = vector.load %arg14[%c0_47, %c0_48] : memref<1x512xf32, #tpu.memory_space<vmem>>, vector<1x512xf32>
    %63 = vector.broadcast %62 : vector<1x512xf32> to vector<8x512xf32>
    %64 = arith.addf %61, %63 : vector<8x512xf32>
    %65 = vector.extract_strided_slice %64 {offsets = [0, 0], sizes = [8, 128], strides = [1, 1]} : vector<8x512xf32> to vector<8x128xf32>
    %66 = arith.negf %65 : vector<8x128xf32>
    %67 = math.exp %66 : vector<8x128xf32>
    %cst_49 = arith.constant 1.000000e+00 : f32
    %68 = vector.broadcast %cst_49 : f32 to vector<8x128xf32>
    %69 = arith.addf %68, %67 : vector<8x128xf32>
    %70 = arith.divf %68, %69 : vector<8x128xf32>
    %71 = vector.extract_strided_slice %64 {offsets = [0, 128], sizes = [8, 128], strides = [1, 1]} : vector<8x512xf32> to vector<8x128xf32>
    %72 = arith.negf %71 : vector<8x128xf32>
    %73 = math.exp %72 : vector<8x128xf32>
    %cst_50 = arith.constant 1.000000e+00 : f32
    %74 = vector.broadcast %cst_50 : f32 to vector<8x128xf32>
    %75 = arith.addf %74, %73 : vector<8x128xf32>
    %76 = arith.divf %74, %75 : vector<8x128xf32>
    %77 = vector.extract_strided_slice %64 {offsets = [0, 256], sizes = [8, 128], strides = [1, 1]} : vector<8x512xf32> to vector<8x128xf32>
    %78 = math.tanh %77 : vector<8x128xf32>
    %79 = vector.extract_strided_slice %64 {offsets = [0, 384], sizes = [8, 128], strides = [1, 1]} : vector<8x512xf32> to vector<8x128xf32>
    %80 = arith.negf %79 : vector<8x128xf32>
    %81 = math.exp %80 : vector<8x128xf32>
    %cst_51 = arith.constant 1.000000e+00 : f32
    %82 = vector.broadcast %cst_51 : f32 to vector<8x128xf32>
    %83 = arith.addf %82, %81 : vector<8x128xf32>
    %84 = arith.divf %82, %83 : vector<8x128xf32>
    %c0_52 = arith.constant 0 : index
    %c0_53 = arith.constant 0 : index
    %85 = vector.load %arg6[%c0_52, %c0_53] : memref<8x128xf32, #tpu.memory_space<vmem>>, vector<8x128xf32>
    %86 = arith.mulf %76, %85 : vector<8x128xf32>
    %87 = arith.mulf %70, %78 : vector<8x128xf32>
    %88 = arith.addf %86, %87 : vector<8x128xf32>
    %89 = math.tanh %88 : vector<8x128xf32>
    %90 = arith.mulf %84, %89 : vector<8x128xf32>
    %c0_54 = arith.constant 0 : index
    %c0_55 = arith.constant 0 : index
    %91 = vector.load %arg22[%c0_54, %c0_55] : memref<8x128xf32, #tpu.memory_space<vmem>>, vector<8x128xf32>
    tpu.vector_store %arg22[%c0_54, %c0_55], %90 {strides = array<i32>} : memref<8x128xf32, #tpu.memory_space<vmem>>, vector<8x128xf32>,
    %c0_56 = arith.constant 0 : index
    %c0_57 = arith.constant 0 : index
    %92 = vector.load %arg23[%c0_56, %c0_57] : memref<8x128xf32, #tpu.memory_space<vmem>>, vector<8x128xf32>
    tpu.vector_store %arg23[%c0_56, %c0_57], %88 {strides = array<i32>} : memref<8x128xf32, #tpu.memory_space<vmem>>, vector<8x128xf32>,
    %c0_58 = arith.constant 0 : index
    %c0_59 = arith.constant 0 : index
    %93 = vector.load %arg18[%c0_58, %c0_59] : memref<128x128xf32, #tpu.memory_space<vmem>>, vector<128x128xf32>
    %cst_60 = arith.constant dense<0.000000e+00> : vector<8x128xf32>
    %94 = tpu.matmul %51, %93, %cst_60 {dimension_numbers = #tpu.dot_dimension_numbers<[1], [0], [0], [1], [0, 0, 1, 1], [], []>} : vector<8x128xf32>, vector<128x128xf32>, vector<8x128xf32> -> vector<8x128xf32>
    %c0_61 = arith.constant 0 : index
    %c0_62 = arith.constant 0 : index
    %95 = vector.load %arg24[%c0_61, %c0_62] : memref<8x128xf32, #tpu.memory_space<vmem>>, vector<8x128xf32>
    tpu.vector_store %arg24[%c0_61, %c0_62], %94 {strides = array<i32>} : memref<8x128xf32, #tpu.memory_space<vmem>>, vector<8x128xf32>,
    return
  }
}

</mosaic_0001>

<llo_original>
// kernel: step.1
$region0: #{step.1}
  #allocation0 [shape = 'u32[]', space=smem, size = 0x4, offset = 0x4, fixed_abs, tag = 'smem constant byte address 0x4 - core index']
  #allocation1 [shape = 'u32[144,128]{1,0:T(1,128)}', space=vmem, size = 0x12000, scoped, tag = 'internal scratch']
  %s0 = inlined_call_operand.vmem [shape: f32[8,128], index: 0, kind: input, shape index: {}]
  %s1 = inlined_call_operand.vmem [shape: f32[8,128], index: 1, kind: input, shape index: {}]
  %s2 = inlined_call_operand.vmem [shape: f32[8,128], index: 2, kind: input, shape index: {}]
  %s3 = inlined_call_operand.vmem [shape: f32[8,128], index: 3, kind: input, shape index: {}]
  %s4 = inlined_call_operand.vmem [shape: f32[8,128], index: 4, kind: input, shape index: {}]
  %s5 = inlined_call_operand.vmem [shape: f32[8,128], index: 5, kind: input, shape index: {}]
  %s6 = inlined_call_operand.vmem [shape: f32[8,128], index: 6, kind: input, shape index: {}]
  %s7 = inlined_call_operand.hbm [shape: f32[128,512], index: 7, kind: input, shape index: {}]
  %s8 = inlined_call_operand.hbm [shape: f32[128,512], index: 8, kind: input, shape index: {}]
  %s9 = inlined_call_operand.hbm [shape: f32[128,512], index: 9, kind: input, shape index: {}]
  %s10 = inlined_call_operand.vmem [shape: f32[1,512], index: 10, kind: input, shape index: {}]
  %s11 = inlined_call_operand.hbm [shape: f32[128,512], index: 11, kind: input, shape index: {}]
  %s12 = inlined_call_operand.hbm [shape: f32[128,512], index: 12, kind: input, shape index: {}]
  %s13 = inlined_call_operand.hbm [shape: f32[128,512], index: 13, kind: input, shape index: {}]
  %s14 = inlined_call_operand.vmem [shape: f32[1,512], index: 14, kind: input, shape index: {}]
  %s15 = inlined_call_operand.vmem [shape: f32[128,128], index: 15, kind: input, shape index: {}]
  %s16 = inlined_call_operand.hbm [shape: f32[128,128], index: 16, kind: input, shape index: {}]
  %s17 = inlined_call_operand.vmem [shape: f32[1,128], index: 17, kind: input, shape index: {}]
  %s18 = inlined_call_operand.hbm [shape: f32[128,128], index: 18, kind: input, shape index: {}]
  %s19 = inlined_call_operand.hbm [shape: f32[8,128], index: 19, kind: output, shape index: {0}]
  %s20 = inlined_call_operand.hbm [shape: f32[8,128], index: 20, kind: output, shape index: {1}]
  %s21 = inlined_call_operand.hbm [shape: f32[8,128], index: 21, kind: output, shape index: {2}]
  %s22 = inlined_call_operand.hbm [shape: f32[8,128], index: 22, kind: output, shape index: {3}]
  %s23 = inlined_call_operand.hbm [shape: f32[8,128], index: 23, kind: output, shape index: {4}]
  %s24 = inlined_call_operand.hbm [shape: f32[8,128], index: 24, kind: output, shape index: {5}]
  %25 = xla_tuple %s19, %s20, %s21, %s22, %s23, %s24
  %s26 = sld [smem:[#allocation0]]
  $region158: #{step.1} parent=0
    _
  %s28 = ssub.s32 1, %s26
  %s29 = scalar_select 0, %s28, %s26
  $region1: #{step.1} parent=0
    #allocation2 [shape = 'u8[262144]{0}', space=vmem, size = 0x40000, scoped, tag = 'input window, operand 7, single buffered']
    #allocation3 [shape = 's32[1]{0}', space=sflag, size = 0x4, scoped, tag = 'scoped memory for step.1']
    #allocation4 [shape = 's32[1]{0}', space=sflag, size = 0x4, scoped, tag = 'scoped memory for step.1']
    #allocation5 [shape = 'u8[262144]{0}', space=vmem, size = 0x40000, scoped, tag = 'input window, operand 8, single buffered']
    #allocation6 [shape = 's32[1]{0}', space=sflag, size = 0x4, scoped, tag = 'scoped memory for step.1']
    #allocation7 [shape = 'u8[262144]{0}', space=vmem, size = 0x40000, scoped, tag = 'input window, operand 9, single buffered']
    #allocation8 [shape = 'u8[262144]{0}', space=vmem, size = 0x40000, scoped, tag = 'input window, operand 11, single buffered']
    #allocation9 [shape = 's32[1]{0}', space=sflag, size = 0x4, scoped, tag = 'scoped memory for step.1']
    #allocation10 [shape = 'u8[262144]{0}', space=vmem, size = 0x40000, scoped, tag = 'input window, operand 12, single buffered']
    #allocation11 [shape = 'u8[262144]{0}', space=vmem, size = 0x40000, scoped, tag = 'input window, operand 13, single buffered']
    #allocation12 [shape = 's32[1]{0}', space=sflag, size = 0x4, scoped, tag = 'scoped memory for step.1']
    #allocation13 [shape = 'u8[65536]{0}', space=vmem, size = 0x10000, scoped, tag = 'input window, operand 16, single buffered']
    #allocation14 [shape = 'u8[65536]{0}', space=vmem, size = 0x10000, scoped, tag = 'input window, operand 18, single buffered']
    #allocation15 [shape = 's32[1]{0}', space=sflag, size = 0x4, scoped, tag = 'scoped memory for step.1']
    #allocation16 [shape = 'u8[4096]{0}', space=vmem, size = 0x1000, scoped, tag = 'output window, operand 0, single buffered']
    #allocation17 [shape = 'u8[4096]{0}', space=vmem, size = 0x1000, scoped, tag = 'output window, operand 1, single buffered']
    #allocation18 [shape = 's32[1]{0}', space=sflag, size = 0x4, scoped, tag = 'scoped memory for step.1']
    #allocation19 [shape = 'u8[4096]{0}', space=vmem, size = 0x1000, scoped, tag = 'output window, operand 2, single buffered']
    #allocation20 [shape = 'u8[4096]{0}', space=vmem, size = 0x1000, scoped, tag = 'output window, operand 3, single buffered']
    #allocation21 [shape = 's32[1]{0}', space=sflag, size = 0x4, scoped, tag = 'scoped memory for step.1']
    #allocation22 [shape = 'u8[4096]{0}', space=vmem, size = 0x1000, scoped, tag = 'output window, operand 4, single buffered']
    #allocation23 [shape = 'u8[4096]{0}', space=vmem, size = 0x1000, scoped, tag = 'output window, operand 5, single buffered']
    #allocation24 [shape = 's32[1]{0}', space=sflag, size = 0x4, scoped, tag = 'scoped memory for step.1']
    %30 = vsyncpa [#allocation3], 0
    %31 = vsyncpa [#allocation6], 0
    %32 = vsyncpa [#allocation9], 0
    %33 = vsyncpa [#allocation12], 0
    %34 = vsyncpa [#allocation15], 0
    %35 = vsyncpa [#allocation4], 0
    %36 = vsyncpa [#allocation18], 0
    %37 = vsyncpa [#allocation21], 0
    %38 = vsyncpa [#allocation24], 0
    // Predicated region
    $region2: #{step.1} parent=1 // pred_check
      _
    $region3: #{step.1} parent=1 // pred_check_branch
      %40 = sbr.rel (0) target = $region5
    $region4: #{step.1} parent=1 // pred_region
      _
    $region5: #{step.1} parent=1 // pred_fallthru
      _
    // Predicated region
    $region6: #{step.1} parent=1 // pred_check
      _
    $region7: #{step.1} parent=1 // pred_check_branch
      %42 = sbr.rel (0) target = $region9
    $region8: #{step.1} parent=1 // pred_region
      _
    $region9: #{step.1} parent=1 // pred_fallthru
      _
    // Predicated region
    $region10: #{step.1} parent=1 // pred_check
      _
    $region11: #{step.1} parent=1 // pred_check_branch
      %44 = sbr.rel (0) target = $region13
    $region12: #{step.1} parent=1 // pred_region
      _
    $region13: #{step.1} parent=1 // pred_fallthru
      _
    // Predicated region
    $region14: #{step.1} parent=1 // pred_check
      _
    $region15: #{step.1} parent=1 // pred_check_branch
      %46 = sbr.rel (0) target = $region17
    $region16: #{step.1} parent=1 // pred_region
      _
    $region17: #{step.1} parent=1 // pred_fallthru
      _
    // Predicated region
    $region18: #{step.1} parent=1 // pred_check
      _
    $region19: #{step.1} parent=1 // pred_check_branch
      %48 = sbr.rel (0) target = $region21
    $region20: #{step.1} parent=1 // pred_region
      _
    $region21: #{step.1} parent=1 // pred_fallthru
      _
    // Predicated region
    $region22: #{step.1} parent=1 // pred_check
      _
    $region23: #{step.1} parent=1 // pred_check_branch
      %50 = sbr.rel (0) target = $region25
    $region24: #{step.1} parent=1 // pred_region
      _
    $region25: #{step.1} parent=1 // pred_fallthru
      _
    // Predicated region
    $region26: #{step.1} parent=1 // pred_check
      _
    $region27: #{step.1} parent=1 // pred_check_branch
      %52 = sbr.rel (0) target = $region29
    $region28: #{step.1} parent=1 // pred_region
      _
    $region29: #{step.1} parent=1 // pred_fallthru
      _
    // Predicated region
    $region30: #{step.1} parent=1 // pred_check
      _
    $region31: #{step.1} parent=1 // pred_check_branch
      %54 = sbr.rel (0) target = $region33
    $region32: #{step.1} parent=1 // pred_region
      %s56 = ssub.s32 8192, 8192
      %57 = vsyncadd [#allocation3], %s56
      %s58 = sshll.u32 [#allocation2], 4
      %s59 = int_to_ptr.vmem [resolvable:$true] %s58
      %64 = dma.hbm_to_vmem [thread:$0]  %s7, 8192, %s59, [#allocation3], 512, 512, 32
    $region33: #{step.1} parent=1 // pred_fallthru
      _
    // Predicated region
    $region34: #{step.1} parent=1 // pred_check
      _
    $region35: #{step.1} parent=1 // pred_check_branch
      %66 = sbr.rel (0) target = $region37
    $region36: #{step.1} parent=1 // pred_region
      %s68 = ssub.s32 8192, 8192
      %69 = vsyncadd [#allocation6], %s68
      %s70 = sshll.u32 [#allocation5], 4
      %s71 = int_to_ptr.vmem [resolvable:$true] %s70
      %76 = dma.hbm_to_vmem [thread:$0]  %s8, 8192, %s71, [#allocation6], 512, 512, 32
    $region37: #{step.1} parent=1 // pred_fallthru
      _
    // Predicated region
    $region38: #{step.1} parent=1 // pred_check
      _
    $region39: #{step.1} parent=1 // pred_check_branch
      %78 = sbr.rel (0) target = $region41
    $region40: #{step.1} parent=1 // pred_region
      %s80 = ssub.s32 8192, 8192
      %81 = vsyncadd [#allocation6], %s80
      %s82 = sshll.u32 [#allocation7], 4
      %s83 = int_to_ptr.vmem [resolvable:$true] %s82
      %88 = dma.hbm_to_vmem [thread:$0]  %s9, 8192, %s83, [#allocation6], 512, 512, 32
    $region41: #{step.1} parent=1 // pred_fallthru
      _
    // Predicated region
    $region42: #{step.1} parent=1 // pred_check
      _
    $region43: #{step.1} parent=1 // pred_check_branch
      %90 = sbr.rel (0) target = $region45
    $region44: #{step.1} parent=1 // pred_region
      _
    $region45: #{step.1} parent=1 // pred_fallthru
      _
    // Predicated region
    $region46: #{step.1} parent=1 // pred_check
      _
    $region47: #{step.1} parent=1 // pred_check_branch
      %92 = sbr.rel (0) target = $region49
    $region48: #{step.1} parent=1 // pred_region
      %s94 = ssub.s32 8192, 8192
      %95 = vsyncadd [#allocation9], %s94
      %s96 = sshll.u32 [#allocation8], 4
      %s97 = int_to_ptr.vmem [resolvable:$true] %s96
      %102 = dma.hbm_to_vmem [thread:$0]  %s11, 8192, %s97, [#allocation9], 512, 512, 32
    $region49: #{step.1} parent=1 // pred_fallthru
      _
    // Predicated region
    $region50: #{step.1} parent=1 // pred_check
      _
    $region51: #{step.1} parent=1 // pred_check_branch
      %104 = sbr.rel (0) target = $region53
    $region52: #{step.1} parent=1 // pred_region
      %s106 = ssub.s32 8192, 8192
      %107 = vsyncadd [#allocation9], %s106
      %s108 = sshll.u32 [#allocation10], 4
      %s109 = int_to_ptr.vmem [resolvable:$true] %s108
      %114 = dma.hbm_to_vmem [thread:$0]  %s12, 8192, %s109, [#allocation9], 512, 512, 32
    $region53: #{step.1} parent=1 // pred_fallthru
      _
    // Predicated region
    $region54: #{step.1} parent=1 // pred_check
      _
    $region55: #{step.1} parent=1 // pred_check_branch
      %116 = sbr.rel (0) target = $region57
    $region56: #{step.1} parent=1 // pred_region
      %s118 = ssub.s32 8192, 8192
      %119 = vsyncadd [#allocation12], %s118
      %s120 = sshll.u32 [#allocation11], 4
      %s121 = int_to_ptr.vmem [resolvable:$true] %s120
      %126 = dma.hbm_to_vmem [thread:$0]  %s13, 8192, %s121, [#allocation12], 512, 512, 32
    $region57: #{step.1} parent=1 // pred_fallthru
      _
    // Predicated region
    $region58: #{step.1} parent=1 // pred_check
      _
    $region59: #{step.1} parent=1 // pred_check_branch
      %128 = sbr.rel (0) target = $region61
    $region60: #{step.1} parent=1 // pred_region
      _
    $region61: #{step.1} parent=1 // pred_fallthru
      _
    // Predicated region
    $region62: #{step.1} parent=1 // pred_check
      _
    $region63: #{step.1} parent=1 // pred_check_branch
      %130 = sbr.rel (0) target = $region65
    $region64: #{step.1} parent=1 // pred_region
      _
    $region65: #{step.1} parent=1 // pred_fallthru
      _
    // Predicated region
    $region66: #{step.1} parent=1 // pred_check
      _
    $region67: #{step.1} parent=1 // pred_check_branch
      %132 = sbr.rel (0) target = $region69
    $region68: #{step.1} parent=1 // pred_region
      %s134 = ssub.s32 2048, 2048
      %135 = vsyncadd [#allocation12], %s134
      %s136 = sshll.u32 [#allocation13], 4
      %s137 = int_to_ptr.vmem [resolvable:$true] %s136
      %142 = dma.hbm_to_vmem [thread:$0]  %s16, 2048, %s137, [#allocation12], 128, 128, 8
    $region69: #{step.1} parent=1 // pred_fallthru
      _
    // Predicated region
    $region70: #{step.1} parent=1 // pred_check
      _
    $region71: #{step.1} parent=1 // pred_check_branch
      %144 = sbr.rel (0) target = $region73
    $region72: #{step.1} parent=1 // pred_region
      _
    $region73: #{step.1} parent=1 // pred_fallthru
      _
    // Predicated region
    $region74: #{step.1} parent=1 // pred_check
      _
    $region75: #{step.1} parent=1 // pred_check_branch
      %146 = sbr.rel (0) target = $region77
    $region76: #{step.1} parent=1 // pred_region
      %s148 = ssub.s32 2048, 2048
      %149 = vsyncadd [#allocation15], %s148
      %s150 = sshll.u32 [#allocation14], 4
      %s151 = int_to_ptr.vmem [resolvable:$true] %s150
      %156 = dma.hbm_to_vmem [thread:$0]  %s18, 2048, %s151, [#allocation15], 128, 128, 8
    $region77: #{step.1} parent=1 // pred_fallthru
      _
    // Predicated region
    $region78: #{step.1} parent=1 // pred_check
      _
    $region79: #{step.1} parent=1 // pred_check_branch
      %158 = sbr.rel (0) target = $region81
    $region80: #{step.1} parent=1 // pred_region
      %159 = dma.done [#allocation3], 8192
    $region81: #{step.1} parent=1 // pred_fallthru
      _
    // Predicated region
    $region82: #{step.1} parent=1 // pred_check
      _
    $region83: #{step.1} parent=1 // pred_check_branch
      %161 = sbr.rel (0) target = $region85
    $region84: #{step.1} parent=1 // pred_region
      %162 = dma.done [#allocation6], 8192
    $region85: #{step.1} parent=1 // pred_fallthru
      _
    // Predicated region
    $region86: #{step.1} parent=1 // pred_check
      _
    $region87: #{step.1} parent=1 // pred_check_branch
      %164 = sbr.rel (0) target = $region89
    $region88: #{step.1} parent=1 // pred_region
      %165 = dma.done [#allocation6], 8192
    $region89: #{step.1} parent=1 // pred_fallthru
      _
    // Predicated region
    $region90: #{step.1} parent=1 // pred_check
      _
    $region91: #{step.1} parent=1 // pred_check_branch
      %167 = sbr.rel (0) target = $region93
    $region92: #{step.1} parent=1 // pred_region
      %168 = dma.done [#allocation9], 8192
    $region93: #{step.1} parent=1 // pred_fallthru
      _
    // Predicated region
    $region94: #{step.1} parent=1 // pred_check
      _
    $region95: #{step.1} parent=1 // pred_check_branch
      %170 = sbr.rel (0) target = $region97
    $region96: #{step.1} parent=1 // pred_region
      %171 = dma.done [#allocation9], 8192
    $region97: #{step.1} parent=1 // pred_fallthru
      _
    // Predicated region
    $region98: #{step.1} parent=1 // pred_check
      _
    $region99: #{step.1} parent=1 // pred_check_branch
      %173 = sbr.rel (0) target = $region101
    $region100: #{step.1} parent=1 // pred_region
      %174 = dma.done [#allocation12], 8192
    $region101: #{step.1} parent=1 // pred_fallthru
      _
    // Predicated region
    $region102: #{step.1} parent=1 // pred_check
      _
    $region103: #{step.1} parent=1 // pred_check_branch
      %176 = sbr.rel (0) target = $region105
    $region104: #{step.1} parent=1 // pred_region
      %177 = dma.done [#allocation12], 2048
    $region105: #{step.1} parent=1 // pred_fallthru
      _
    // Predicated region
    $region106: #{step.1} parent=1 // pred_check
      _
    $region107: #{step.1} parent=1 // pred_check_branch
      %179 = sbr.rel (0) target = $region109
    $region108: #{step.1} parent=1 // pred_region
      %180 = dma.done [#allocation15], 2048
    $region109: #{step.1} parent=1 // pred_fallthru
      _
    %v181 = vld [vmem:[%s0] sm:$0xff]
    %v182 = vld [vmem:[%s1] sm:$0xff]
    %v183 = vld [vmem:[%s2] sm:$0xff]
    %v184 = vld [vmem:[#allocation2] sm:$0xff]
    %v185 = vld [vmem:[#allocation2 + $0x8] sm:$0xff]
    %v186 = vld [vmem:[#allocation2 + $0x10] sm:$0xff]
    %v187 = vld [vmem:[#allocation2 + $0x18] sm:$0xff]
    %v188 = vld [vmem:[#allocation2 + $0x20] sm:$0xff]
    %v189 = vld [vmem:[#allocation2 + $0x28] sm:$0xff]
    %v190 = vld [vmem:[#allocation2 + $0x30] sm:$0xff]
    %v191 = vld [vmem:[#allocation2 + $0x38] sm:$0xff]
    %v192 = vld [vmem:[#allocation2 + $0x40] sm:$0xff]
    %v193 = vld [vmem:[#allocation2 + $0x48] sm:$0xff]
    %v194 = vld [vmem:[#allocation2 + $0x50] sm:$0xff]
    %v195 = vld [vmem:[#allocation2 + $0x58] sm:$0xff]
    %v196 = vld [vmem:[#allocation2 + $0x60] sm:$0xff]
    %v197 = vld [vmem:[#allocation2 + $0x68] sm:$0xff]
    %v198 = vld [vmem:[#allocation2 + $0x70] sm:$0xff]
    %v199 = vld [vmem:[#allocation2 + $0x78] sm:$0xff]
    %v200 = vld [vmem:[#allocation2 + $0x80] sm:$0xff]
    %v201 = vld [vmem:[#allocation2 + $0x88] sm:$0xff]
    %v202 = vld [vmem:[#allocation2 + $0x90] sm:$0xff]
    %v203 = vld [vmem:[#allocation2 + $0x98] sm:$0xff]
    %v204 = vld [vmem:[#allocation2 + $0xa0] sm:$0xff]
    %v205 = vld [vmem:[#allocation2 + $0xa8] sm:$0xff]
    %v206 = vld [vmem:[#allocation2 + $0xb0] sm:$0xff]
    %v207 = vld [vmem:[#allocation2 + $0xb8] sm:$0xff]
    %v208 = vld [vmem:[#allocation2 + $0xc0] sm:$0xff]
    %v209 = vld [vmem:[#allocation2 + $0xc8] sm:$0xff]
    %v210 = vld [vmem:[#allocation2 + $0xd0] sm:$0xff]
    %v211 = vld [vmem:[#allocation2 + $0xd8] sm:$0xff]
    %v212 = vld [vmem:[#allocation2 + $0xe0] sm:$0xff]
    %v213 = vld [vmem:[#allocation2 + $0xe8] sm:$0xff]
    %v214 = vld [vmem:[#allocation2 + $0xf0] sm:$0xff]
    %v215 = vld [vmem:[#allocation2 + $0xf8] sm:$0xff]
    %v216 = vld [vmem:[#allocation2 + $0x100] sm:$0xff]
    %v217 = vld [vmem:[#allocation2 + $0x108] sm:$0xff]
    %v218 = vld [vmem:[#allocation2 + $0x110] sm:$0xff]
    %v219 = vld [vmem:[#allocation2 + $0x118] sm:$0xff]
    %v220 = vld [vmem:[#allocation2 + $0x120] sm:$0xff]
    %v221 = vld [vmem:[#allocation2 + $0x128] sm:$0xff]
    %v222 = vld [vmem:[#allocation2 + $0x130] sm:$0xff]
    %v223 = vld [vmem:[#allocation2 + $0x138] sm:$0xff]
    %v224 = vld [vmem:[#allocation2 + $0x140] sm:$0xff]
    %v225 = vld [vmem:[#allocation2 + $0x148] sm:$0xff]
    %v226 = vld [vmem:[#allocation2 + $0x150] sm:$0xff]
    %v227 = vld [vmem:[#allocation2 + $0x158] sm:$0xff]
    %v228 = vld [vmem:[#allocation2 + $0x160] sm:$0xff]
    %v229 = vld [vmem:[#allocation2 + $0x168] sm:$0xff]
    %v230 = vld [vmem:[#allocation2 + $0x170] sm:$0xff]
    %v231 = vld [vmem:[#allocation2 + $0x178] sm:$0xff]
    %v232 = vld [vmem:[#allocation2 + $0x180] sm:$0xff]
    %v233 = vld [vmem:[#allocation2 + $0x188] sm:$0xff]
    %v234 = vld [vmem:[#allocation2 + $0x190] sm:$0xff]
    %v235 = vld [vmem:[#allocation2 + $0x198] sm:$0xff]
    %v236 = vld [vmem:[#allocation2 + $0x1a0] sm:$0xff]
    %v237 = vld [vmem:[#allocation2 + $0x1a8] sm:$0xff]
    %v238 = vld [vmem:[#allocation2 + $0x1b0] sm:$0xff]
    %v239 = vld [vmem:[#allocation2 + $0x1b8] sm:$0xff]
    %v240 = vld [vmem:[#allocation2 + $0x1c0] sm:$0xff]
    %v241 = vld [vmem:[#allocation2 + $0x1c8] sm:$0xff]
    %v242 = vld [vmem:[#allocation2 + $0x1d0] sm:$0xff]
    %v243 = vld [vmem:[#allocation2 + $0x1d8] sm:$0xff]
    %v244 = vld [vmem:[#allocation2 + $0x1e0] sm:$0xff]
    %v245 = vld [vmem:[#allocation2 + $0x1e8] sm:$0xff]
    %v246 = vld [vmem:[#allocation2 + $0x1f0] sm:$0xff]
    %v247 = vld [vmem:[#allocation2 + $0x1f8] sm:$0xff]
    %v248 = vld [vmem:[#allocation5] sm:$0xff]
    %v249 = vld [vmem:[#allocation5 + $0x8] sm:$0xff]
    %v250 = vld [vmem:[#allocation5 + $0x10] sm:$0xff]
    %v251 = vld [vmem:[#allocation5 + $0x18] sm:$0xff]
    %v252 = vld [vmem:[#allocation5 + $0x20] sm:$0xff]
    %v253 = vld [vmem:[#allocation5 + $0x28] sm:$0xff]
    %v254 = vld [vmem:[#allocation5 + $0x30] sm:$0xff]
    %v255 = vld [vmem:[#allocation5 + $0x38] sm:$0xff]
    %v256 = vld [vmem:[#allocation5 + $0x40] sm:$0xff]
    %v257 = vld [vmem:[#allocation5 + $0x48] sm:$0xff]
    %v258 = vld [vmem:[#allocation5 + $0x50] sm:$0xff]
    %v259 = vld [vmem:[#allocation5 + $0x58] sm:$0xff]
    %v260 = vld [vmem:[#allocation5 + $0x60] sm:$0xff]
    %v261 = vld [vmem:[#allocation5 + $0x68] sm:$0xff]
    %v262 = vld [vmem:[#allocation5 + $0x70] sm:$0xff]
    %v263 = vld [vmem:[#allocation5 + $0x78] sm:$0xff]
    %v264 = vld [vmem:[#allocation5 + $0x80] sm:$0xff]
    %v265 = vld [vmem:[#allocation5 + $0x88] sm:$0xff]
    %v266 = vld [vmem:[#allocation5 + $0x90] sm:$0xff]
    %v267 = vld [vmem:[#allocation5 + $0x98] sm:$0xff]
    %v268 = vld [vmem:[#allocation5 + $0xa0] sm:$0xff]
    %v269 = vld [vmem:[#allocation5 + $0xa8] sm:$0xff]
    %v270 = vld [vmem:[#allocation5 + $0xb0] sm:$0xff]
    %v271 = vld [vmem:[#allocation5 + $0xb8] sm:$0xff]
    %v272 = vld [vmem:[#allocation5 + $0xc0] sm:$0xff]
    %v273 = vld [vmem:[#allocation5 + $0xc8] sm:$0xff]
    %v274 = vld [vmem:[#allocation5 + $0xd0] sm:$0xff]
    %v275 = vld [vmem:[#allocation5 + $0xd8] sm:$0xff]
    %v276 = vld [vmem:[#allocation5 + $0xe0] sm:$0xff]
    %v277 = vld [vmem:[#allocation5 + $0xe8] sm:$0xff]
    %v278 = vld [vmem:[#allocation5 + $0xf0] sm:$0xff]
    %v279 = vld [vmem:[#allocation5 + $0xf8] sm:$0xff]
    %v280 = vld [vmem:[#allocation5 + $0x100] sm:$0xff]
    %v281 = vld [vmem:[#allocation5 + $0x108] sm:$0xff]
    %v282 = vld [vmem:[#allocation5 + $0x110] sm:$0xff]
    %v283 = vld [vmem:[#allocation5 + $0x118] sm:$0xff]
    %v284 = vld [vmem:[#allocation5 + $0x120] sm:$0xff]
    %v285 = vld [vmem:[#allocation5 + $0x128] sm:$0xff]
    %v286 = vld [vmem:[#allocation5 + $0x130] sm:$0xff]
    %v287 = vld [vmem:[#allocation5 + $0x138] sm:$0xff]
    %v288 = vld [vmem:[#allocation5 + $0x140] sm:$0xff]
    %v289 = vld [vmem:[#allocation5 + $0x148] sm:$0xff]
    %v290 = vld [vmem:[#allocation5 + $0x150] sm:$0xff]
    %v291 = vld [vmem:[#allocation5 + $0x158] sm:$0xff]
    %v292 = vld [vmem:[#allocation5 + $0x160] sm:$0xff]
    %v293 = vld [vmem:[#allocation5 + $0x168] sm:$0xff]
    %v294 = vld [vmem:[#allocation5 + $0x170] sm:$0xff]
    %v295 = vld [vmem:[#allocation5 + $0x178] sm:$0xff]
    %v296 = vld [vmem:[#allocation5 + $0x180] sm:$0xff]
    %v297 = vld [vmem:[#allocation5 + $0x188] sm:$0xff]
    %v298 = vld [vmem:[#allocation5 + $0x190] sm:$0xff]
    %v299 = vld [vmem:[#allocation5 + $0x198] sm:$0xff]
    %v300 = vld [vmem:[#allocation5 + $0x1a0] sm:$0xff]
    %v301 = vld [vmem:[#allocation5 + $0x1a8] sm:$0xff]
    %v302 = vld [vmem:[#allocation5 + $0x1b0] sm:$0xff]
    %v303 = vld [vmem:[#allocation5 + $0x1b8] sm:$0xff]
    %v304 = vld [vmem:[#allocation5 + $0x1c0] sm:$0xff]
    %v305 = vld [vmem:[#allocation5 + $0x1c8] sm:$0xff]
    %v306 = vld [vmem:[#allocation5 + $0x1d0] sm:$0xff]
    %v307 = vld [vmem:[#allocation5 + $0x1d8] sm:$0xff]
    %v308 = vld [vmem:[#allocation5 + $0x1e0] sm:$0xff]
    %v309 = vld [vmem:[#allocation5 + $0x1e8] sm:$0xff]
    %v310 = vld [vmem:[#allocation5 + $0x1f0] sm:$0xff]
    %v311 = vld [vmem:[#allocation5 + $0x1f8] sm:$0xff]
    %312 = vmatprep.subr.mxu0 %v309
    %313 = vmatpush1.msra.mxu0 %v308
    %314 = vmatprep.subr.mxu0 %v305
    %315 = vmatpush1.msra.mxu0 %v304
    %316 = vmatprep.subr.mxu0 %v301
    %317 = vmatpush1.msra.mxu0 %v300
    %318 = vmatprep.subr.mxu0 %v297
    %319 = vmatpush1.msra.mxu0 %v296
    %320 = vmatprep.subr.mxu0 %v293
    %321 = vmatpush1.msra.mxu0 %v292
    %322 = vmatprep.subr.mxu0 %v289
    %323 = vmatpush1.msra.mxu0 %v288
    %324 = vmatprep.subr.mxu0 %v285
    %325 = vmatpush1.msra.mxu0 %v284
    %326 = vmatprep.subr.mxu0 %v281
    %327 = vmatpush1.msra.mxu0 %v280
    %328 = vmatprep.subr.mxu0 %v277
    %329 = vmatpush1.msra.mxu0 %v276
    %330 = vmatprep.subr.mxu0 %v273
    %331 = vmatpush1.msra.mxu0 %v272
    %332 = vmatprep.subr.mxu0 %v269
    %333 = vmatpush1.msra.mxu0 %v268
    %334 = vmatprep.subr.mxu0 %v265
    %335 = vmatpush1.msra.mxu0 %v264
    %336 = vmatprep.subr.mxu0 %v261
    %337 = vmatpush1.msra.mxu0 %v260
    %338 = vmatprep.subr.mxu0 %v257
    %339 = vmatpush1.msra.mxu0 %v256
    %340 = vmatprep.subr.mxu0 %v253
    %341 = vmatpush1.msra.mxu0 %v252
    %342 = vmatprep.subr.mxu0 %v249
    %343 = vmatpush1.msra.mxu0 %v248
    %344 = vmatprep.subr.mxu0 0.0
    %345 = vmatpush2.msra.mxu0 0.0
    %346 = vmatprep.subr.mxu0 0.0
    %347 = vmatpush2.msra.mxu0 0.0
    %348 = vmatprep.subr.mxu0 0.0
    %349 = vmatpush2.msra.mxu0 0.0
    %350 = vmatprep.subr.mxu0 0.0
    %351 = vmatpush2.msra.mxu0 0.0
    %352 = vmatprep.subr.mxu0 0.0
    %353 = vmatpush2.msra.mxu0 0.0
    %354 = vmatprep.subr.mxu0 0.0
    %355 = vmatpush2.msra.mxu0 0.0
    %356 = vmatprep.subr.mxu0 0.0
    %357 = vmatpush2.msra.mxu0 0.0
    %358 = vmatprep.subr.mxu0 0.0
    %359 = vmatpush2.msra.mxu0 0.0
    %360 = vmatprep.subr.mxu0 0.0
    %361 = vmatpush2.msra.mxu0 0.0
    %362 = vmatprep.subr.mxu0 0.0
    %363 = vmatpush2.msra.mxu0 0.0
    %364 = vmatprep.subr.mxu0 0.0
    %365 = vmatpush2.msra.mxu0 0.0
    %366 = vmatprep.subr.mxu0 0.0
    %367 = vmatpush2.msra.mxu0 0.0
    %368 = vmatprep.subr.mxu0 0.0
    %369 = vmatpush2.msra.mxu0 0.0
    %370 = vmatprep.subr.mxu0 0.0
    %371 = vmatpush2.msra.mxu0 0.0
    %372 = vmatprep.subr.mxu0 0.0
    %373 = vmatpush2.msra.mxu0 0.0
    %374 = vmatprep.subr.mxu0 0.0
    %375 = vmatpush2.msra.mxu0 0.0
    %376 = vmatprep.mubr.f32.mxu0 0.0
    %377 = vmatmul.mubr.f32.gmra.mxu0 %v182
    %v378 = vpop.f32.mrf.mxu0
    %v379 = vadd.f32 0.0, %v378
    %v380 = vpop.f32.mrf.mxu0
    %v381 = vadd.f32 0.0, %v380
    %382 = vdwg.mxu0
    %383 = vmatprep.subr.mxu0 %v311
    %384 = vmatpush1.msra.mxu0 %v310
    %385 = vmatprep.subr.mxu0 %v307
    %386 = vmatpush1.msra.mxu0 %v306
    %387 = vmatprep.subr.mxu0 %v303
    %388 = vmatpush1.msra.mxu0 %v302
    %389 = vmatprep.subr.mxu0 %v299
    %390 = vmatpush1.msra.mxu0 %v298
    %391 = vmatprep.subr.mxu0 %v295
    %392 = vmatpush1.msra.mxu0 %v294
    %393 = vmatprep.subr.mxu0 %v291
    %394 = vmatpush1.msra.mxu0 %v290
    %395 = vmatprep.subr.mxu0 %v287
    %396 = vmatpush1.msra.mxu0 %v286
    %397 = vmatprep.subr.mxu0 %v283
    %398 = vmatpush1.msra.mxu0 %v282
    %399 = vmatprep.subr.mxu0 %v279
    %400 = vmatpush1.msra.mxu0 %v278
    %401 = vmatprep.subr.mxu0 %v275
    %402 = vmatpush1.msra.mxu0 %v274
    %403 = vmatprep.subr.mxu0 %v271
    %404 = vmatpush1.msra.mxu0 %v270
    %405 = vmatprep.subr.mxu0 %v267
    %406 = vmatpush1.msra.mxu0 %v266
    %407 = vmatprep.subr.mxu0 %v263
    %408 = vmatpush1.msra.mxu0 %v262
    %409 = vmatprep.subr.mxu0 %v259
    %410 = vmatpush1.msra.mxu0 %v258
    %411 = vmatprep.subr.mxu0 %v255
    %412 = vmatpush1.msra.mxu0 %v254
    %413 = vmatprep.subr.mxu0 %v251
    %414 = vmatpush1.msra.mxu0 %v250
    %415 = vmatprep.subr.mxu0 0.0
    %416 = vmatpush2.msra.mxu0 0.0
    %417 = vmatprep.subr.mxu0 0.0
    %418 = vmatpush2.msra.mxu0 0.0
    %419 = vmatprep.subr.mxu0 0.0
    %420 = vmatpush2.msra.mxu0 0.0
    %421 = vmatprep.subr.mxu0 0.0
    %422 = vmatpush2.msra.mxu0 0.0
    %423 = vmatprep.subr.mxu0 0.0
    %424 = vmatpush2.msra.mxu0 0.0
    %425 = vmatprep.subr.mxu0 0.0
    %426 = vmatpush2.msra.mxu0 0.0
    %427 = vmatprep.subr.mxu0 0.0
    %428 = vmatpush2.msra.mxu0 0.0
    %429 = vmatprep.subr.mxu0 0.0
    %430 = vmatpush2.msra.mxu0 0.0
    %431 = vmatprep.subr.mxu0 0.0
    %432 = vmatpush2.msra.mxu0 0.0
    %433 = vmatprep.subr.mxu0 0.0
    %434 = vmatpush2.msra.mxu0 0.0
    %435 = vmatprep.subr.mxu0 0.0
    %436 = vmatpush2.msra.mxu0 0.0
    %437 = vmatprep.subr.mxu0 0.0
    %438 = vmatpush2.msra.mxu0 0.0
    %439 = vmatprep.subr.mxu0 0.0
    %440 = vmatpush2.msra.mxu0 0.0
    %441 = vmatprep.subr.mxu0 0.0
    %442 = vmatpush2.msra.mxu0 0.0
    %443 = vmatprep.subr.mxu0 0.0
    %444 = vmatpush2.msra.mxu0 0.0
    %445 = vmatprep.subr.mxu0 0.0
    %446 = vmatpush2.msra.mxu0 0.0
    %447 = vmatprep.mubr.f32.mxu0 0.0
    %448 = vmatmul.mubr.f32.gmra.mxu0 %v182
    %v449 = vpop.f32.mrf.mxu0
    %v450 = vadd.f32 0.0, %v449
    %v451 = vpop.f32.mrf.mxu0
    %v452 = vadd.f32 0.0, %v451
    %453 = vdwg.mxu0
    %454 = vmatprep.subr.mxu0 %v245
    %455 = vmatpush1.msra.mxu0 %v244
    %456 = vmatprep.subr.mxu0 %v241
    %457 = vmatpush1.msra.mxu0 %v240
    %458 = vmatprep.subr.mxu0 %v237
    %459 = vmatpush1.msra.mxu0 %v236
    %460 = vmatprep.subr.mxu0 %v233
    %461 = vmatpush1.msra.mxu0 %v232
    %462 = vmatprep.subr.mxu0 %v229
    %463 = vmatpush1.msra.mxu0 %v228
    %464 = vmatprep.subr.mxu0 %v225
    %465 = vmatpush1.msra.mxu0 %v224
    %466 = vmatprep.subr.mxu0 %v221
    %467 = vmatpush1.msra.mxu0 %v220
    %468 = vmatprep.subr.mxu0 %v217
    %469 = vmatpush1.msra.mxu0 %v216
    %470 = vmatprep.subr.mxu0 %v213
    %471 = vmatpush1.msra.mxu0 %v212
    %472 = vmatprep.subr.mxu0 %v209
    %473 = vmatpush1.msra.mxu0 %v208
    %474 = vmatprep.subr.mxu0 %v205
    %475 = vmatpush1.msra.mxu0 %v204
    %476 = vmatprep.subr.mxu0 %v201
    %477 = vmatpush1.msra.mxu0 %v200
    %478 = vmatprep.subr.mxu0 %v197
    %479 = vmatpush1.msra.mxu0 %v196
    %480 = vmatprep.subr.mxu0 %v193
    %481 = vmatpush1.msra.mxu0 %v192
    %482 = vmatprep.subr.mxu0 %v189
    %483 = vmatpush1.msra.mxu0 %v188
    %484 = vmatprep.subr.mxu0 %v185
    %485 = vmatpush1.msra.mxu0 %v184
    %486 = vmatprep.subr.mxu0 0.0
    %487 = vmatpush2.msra.mxu0 0.0
    %488 = vmatprep.subr.mxu0 0.0
    %489 = vmatpush2.msra.mxu0 0.0
    %490 = vmatprep.subr.mxu0 0.0
    %491 = vmatpush2.msra.mxu0 0.0
    %492 = vmatprep.subr.mxu0 0.0
    %493 = vmatpush2.msra.mxu0 0.0
    %494 = vmatprep.subr.mxu0 0.0
    %495 = vmatpush2.msra.mxu0 0.0
    %496 = vmatprep.subr.mxu0 0.0
    %497 = vmatpush2.msra.mxu0 0.0
    %498 = vmatprep.subr.mxu0 0.0
    %499 = vmatpush2.msra.mxu0 0.0
    %500 = vmatprep.subr.mxu0 0.0
    %501 = vmatpush2.msra.mxu0 0.0
    %502 = vmatprep.subr.mxu0 0.0
    %503 = vmatpush2.msra.mxu0 0.0
    %504 = vmatprep.subr.mxu0 0.0
    %505 = vmatpush2.msra.mxu0 0.0
    %506 = vmatprep.subr.mxu0 0.0
    %507 = vmatpush2.msra.mxu0 0.0
    %508 = vmatprep.subr.mxu0 0.0
    %509 = vmatpush2.msra.mxu0 0.0
    %510 = vmatprep.subr.mxu0 0.0
    %511 = vmatpush2.msra.mxu0 0.0
    %512 = vmatprep.subr.mxu0 0.0
    %513 = vmatpush2.msra.mxu0 0.0
    %514 = vmatprep.subr.mxu0 0.0
    %515 = vmatpush2.msra.mxu0 0.0
    %516 = vmatprep.subr.mxu0 0.0
    %517 = vmatpush2.msra.mxu0 0.0
    %518 = vmatprep.mubr.f32.mxu0 0.0
    %519 = vmatmul.mubr.f32.gmra.mxu0 %v181
    %v520 = vpop.f32.mrf.mxu0
    %v521 = vadd.f32 %v379, %v520
    %v522 = vpop.f32.mrf.mxu0
    %v523 = vadd.f32 %v381, %v522
    %524 = vdwg.mxu0
    %525 = vmatprep.subr.mxu0 %v247
    %526 = vmatpush1.msra.mxu0 %v246
    %527 = vmatprep.subr.mxu0 %v243
    %528 = vmatpush1.msra.mxu0 %v242
    %529 = vmatprep.subr.mxu0 %v239
    %530 = vmatpush1.msra.mxu0 %v238
    %531 = vmatprep.subr.mxu0 %v235
    %532 = vmatpush1.msra.mxu0 %v234
    %533 = vmatprep.subr.mxu0 %v231
    %534 = vmatpush1.msra.mxu0 %v230
    %535 = vmatprep.subr.mxu0 %v227
    %536 = vmatpush1.msra.mxu0 %v226
    %537 = vmatprep.subr.mxu0 %v223
    %538 = vmatpush1.msra.mxu0 %v222
    %539 = vmatprep.subr.mxu0 %v219
    %540 = vmatpush1.msra.mxu0 %v218
    %541 = vmatprep.subr.mxu0 %v215
    %542 = vmatpush1.msra.mxu0 %v214
    %543 = vmatprep.subr.mxu0 %v211
    %544 = vmatpush1.msra.mxu0 %v210
    %545 = vmatprep.subr.mxu0 %v207
    %546 = vmatpush1.msra.mxu0 %v206
    %547 = vmatprep.subr.mxu0 %v203
    %548 = vmatpush1.msra.mxu0 %v202
    %549 = vmatprep.subr.mxu0 %v199
    %550 = vmatpush1.msra.mxu0 %v198
    %551 = vmatprep.subr.mxu0 %v195
    %552 = vmatpush1.msra.mxu0 %v194
    %553 = vmatprep.subr.mxu0 %v191
    %554 = vmatpush1.msra.mxu0 %v190
    %555 = vmatprep.subr.mxu0 %v187
    %556 = vmatpush1.msra.mxu0 %v186
    %557 = vmatprep.subr.mxu0 0.0
    %558 = vmatpush2.msra.mxu0 0.0
    %559 = vmatprep.subr.mxu0 0.0
    %560 = vmatpush2.msra.mxu0 0.0
    %561 = vmatprep.subr.mxu0 0.0
    %562 = vmatpush2.msra.mxu0 0.0
    %563 = vmatprep.subr.mxu0 0.0
    %564 = vmatpush2.msra.mxu0 0.0
    %565 = vmatprep.subr.mxu0 0.0
    %566 = vmatpush2.msra.mxu0 0.0
    %567 = vmatprep.subr.mxu0 0.0
    %568 = vmatpush2.msra.mxu0 0.0
    %569 = vmatprep.subr.mxu0 0.0
    %570 = vmatpush2.msra.mxu0 0.0
    %571 = vmatprep.subr.mxu0 0.0
    %572 = vmatpush2.msra.mxu0 0.0
    %573 = vmatprep.subr.mxu0 0.0
    %574 = vmatpush2.msra.mxu0 0.0
    %575 = vmatprep.subr.mxu0 0.0
    %576 = vmatpush2.msra.mxu0 0.0
    %577 = vmatprep.subr.mxu0 0.0
    %578 = vmatpush2.msra.mxu0 0.0
    %579 = vmatprep.subr.mxu0 0.0
    %580 = vmatpush2.msra.mxu0 0.0
    %581 = vmatprep.subr.mxu0 0.0
    %582 = vmatpush2.msra.mxu0 0.0
    %583 = vmatprep.subr.mxu0 0.0
    %584 = vmatpush2.msra.mxu0 0.0
    %585 = vmatprep.subr.mxu0 0.0
    %586 = vmatpush2.msra.mxu0 0.0
    %587 = vmatprep.subr.mxu0 0.0
    %588 = vmatpush2.msra.mxu0 0.0
    %589 = vmatprep.mubr.f32.mxu0 0.0
    %590 = vmatmul.mubr.f32.gmra.mxu0 %v181
    %v591 = vpop.f32.mrf.mxu0
    %v592 = vadd.f32 %v450, %v591
    %v593 = vpop.f32.mrf.mxu0
    %v594 = vadd.f32 %v452, %v593
    %595 = vdwg.mxu0
    %v596 = vld [vmem:[#allocation7] sm:$0xff]
    %v597 = vld [vmem:[#allocation7 + $0x8] sm:$0xff]
    %v598 = vld [vmem:[#allocation7 + $0x10] sm:$0xff]
    %v599 = vld [vmem:[#allocation7 + $0x18] sm:$0xff]
    %v600 = vld [vmem:[#allocation7 + $0x20] sm:$0xff]
    %v601 = vld [vmem:[#allocation7 + $0x28] sm:$0xff]
    %v602 = vld [vmem:[#allocation7 + $0x30] sm:$0xff]
    %v603 = vld [vmem:[#allocation7 + $0x38] sm:$0xff]
    %v604 = vld [vmem:[#allocation7 + $0x40] sm:$0xff]
    %v605 = vld [vmem:[#allocation7 + $0x48] sm:$0xff]
    %v606 = vld [vmem:[#allocation7 + $0x50] sm:$0xff]
    %v607 = vld [vmem:[#allocation7 + $0x58] sm:$0xff]
    %v608 = vld [vmem:[#allocation7 + $0x60] sm:$0xff]
    %v609 = vld [vmem:[#allocation7 + $0x68] sm:$0xff]
    %v610 = vld [vmem:[#allocation7 + $0x70] sm:$0xff]
    %v611 = vld [vmem:[#allocation7 + $0x78] sm:$0xff]
    %v612 = vld [vmem:[#allocation7 + $0x80] sm:$0xff]
    %v613 = vld [vmem:[#allocation7 + $0x88] sm:$0xff]
    %v614 = vld [vmem:[#allocation7 + $0x90] sm:$0xff]
    %v615 = vld [vmem:[#allocation7 + $0x98] sm:$0xff]
    %v616 = vld [vmem:[#allocation7 + $0xa0] sm:$0xff]
    %v617 = vld [vmem:[#allocation7 + $0xa8] sm:$0xff]
    %v618 = vld [vmem:[#allocation7 + $0xb0] sm:$0xff]
    %v619 = vld [vmem:[#allocation7 + $0xb8] sm:$0xff]
    %v620 = vld [vmem:[#allocation7 + $0xc0] sm:$0xff]
    %v621 = vld [vmem:[#allocation7 + $0xc8] sm:$0xff]
    %v622 = vld [vmem:[#allocation7 + $0xd0] sm:$0xff]
    %v623 = vld [vmem:[#allocation7 + $0xd8] sm:$0xff]
    %v624 = vld [vmem:[#allocation7 + $0xe0] sm:$0xff]
    %v625 = vld [vmem:[#allocation7 + $0xe8] sm:$0xff]
    %v626 = vld [vmem:[#allocation7 + $0xf0] sm:$0xff]
    %v627 = vld [vmem:[#allocation7 + $0xf8] sm:$0xff]
    %v628 = vld [vmem:[#allocation7 + $0x100] sm:$0xff]
    %v629 = vld [vmem:[#allocation7 + $0x108] sm:$0xff]
    %v630 = vld [vmem:[#allocation7 + $0x110] sm:$0xff]
    %v631 = vld [vmem:[#allocation7 + $0x118] sm:$0xff]
    %v632 = vld [vmem:[#allocation7 + $0x120] sm:$0xff]
    %v633 = vld [vmem:[#allocation7 + $0x128] sm:$0xff]
    %v634 = vld [vmem:[#allocation7 + $0x130] sm:$0xff]
    %v635 = vld [vmem:[#allocation7 + $0x138] sm:$0xff]
    %v636 = vld [vmem:[#allocation7 + $0x140] sm:$0xff]
    %v637 = vld [vmem:[#allocation7 + $0x148] sm:$0xff]
    %v638 = vld [vmem:[#allocation7 + $0x150] sm:$0xff]
    %v639 = vld [vmem:[#allocation7 + $0x158] sm:$0xff]
    %v640 = vld [vmem:[#allocation7 + $0x160] sm:$0xff]
    %v641 = vld [vmem:[#allocation7 + $0x168] sm:$0xff]
    %v642 = vld [vmem:[#allocation7 + $0x170] sm:$0xff]
    %v643 = vld [vmem:[#allocation7 + $0x178] sm:$0xff]
    %v644 = vld [vmem:[#allocation7 + $0x180] sm:$0xff]
    %v645 = vld [vmem:[#allocation7 + $0x188] sm:$0xff]
    %v646 = vld [vmem:[#allocation7 + $0x190] sm:$0xff]
    %v647 = vld [vmem:[#allocation7 + $0x198] sm:$0xff]
    %v648 = vld [vmem:[#allocation7 + $0x1a0] sm:$0xff]
    %v649 = vld [vmem:[#allocation7 + $0x1a8] sm:$0xff]
    %v650 = vld [vmem:[#allocation7 + $0x1b0] sm:$0xff]
    %v651 = vld [vmem:[#allocation7 + $0x1b8] sm:$0xff]
    %v652 = vld [vmem:[#allocation7 + $0x1c0] sm:$0xff]
    %v653 = vld [vmem:[#allocation7 + $0x1c8] sm:$0xff]
    %v654 = vld [vmem:[#allocation7 + $0x1d0] sm:$0xff]
    %v655 = vld [vmem:[#allocation7 + $0x1d8] sm:$0xff]
    %v656 = vld [vmem:[#allocation7 + $0x1e0] sm:$0xff]
    %v657 = vld [vmem:[#allocation7 + $0x1e8] sm:$0xff]
    %v658 = vld [vmem:[#allocation7 + $0x1f0] sm:$0xff]
    %v659 = vld [vmem:[#allocation7 + $0x1f8] sm:$0xff]
    %660 = vmatprep.subr.mxu0 %v657
    %661 = vmatpush1.msra.mxu0 %v656
    %662 = vmatprep.subr.mxu0 %v653
    %663 = vmatpush1.msra.mxu0 %v652
    %664 = vmatprep.subr.mxu0 %v649
    %665 = vmatpush1.msra.mxu0 %v648
    %666 = vmatprep.subr.mxu0 %v645
    %667 = vmatpush1.msra.mxu0 %v644
    %668 = vmatprep.subr.mxu0 %v641
    %669 = vmatpush1.msra.mxu0 %v640
    %670 = vmatprep.subr.mxu0 %v637
    %671 = vmatpush1.msra.mxu0 %v636
    %672 = vmatprep.subr.mxu0 %v633
    %673 = vmatpush1.msra.mxu0 %v632
    %674 = vmatprep.subr.mxu0 %v629
    %675 = vmatpush1.msra.mxu0 %v628
    %676 = vmatprep.subr.mxu0 %v625
    %677 = vmatpush1.msra.mxu0 %v624
    %678 = vmatprep.subr.mxu0 %v621
    %679 = vmatpush1.msra.mxu0 %v620
    %680 = vmatprep.subr.mxu0 %v617
    %681 = vmatpush1.msra.mxu0 %v616
    %682 = vmatprep.subr.mxu0 %v613
    %683 = vmatpush1.msra.mxu0 %v612
    %684 = vmatprep.subr.mxu0 %v609
    %685 = vmatpush1.msra.mxu0 %v608
    %686 = vmatprep.subr.mxu0 %v605
    %687 = vmatpush1.msra.mxu0 %v604
    %688 = vmatprep.subr.mxu0 %v601
    %689 = vmatpush1.msra.mxu0 %v600
    %690 = vmatprep.subr.mxu0 %v597
    %691 = vmatpush1.msra.mxu0 %v596
    %692 = vmatprep.subr.mxu0 0.0
    %693 = vmatpush2.msra.mxu0 0.0
    %694 = vmatprep.subr.mxu0 0.0
    %695 = vmatpush2.msra.mxu0 0.0
    %696 = vmatprep.subr.mxu0 0.0
    %697 = vmatpush2.msra.mxu0 0.0
    %698 = vmatprep.subr.mxu0 0.0
    %699 = vmatpush2.msra.mxu0 0.0
    %700 = vmatprep.subr.mxu0 0.0
    %701 = vmatpush2.msra.mxu0 0.0
    %702 = vmatprep.subr.mxu0 0.0
    %703 = vmatpush2.msra.mxu0 0.0
    %704 = vmatprep.subr.mxu0 0.0
    %705 = vmatpush2.msra.mxu0 0.0
    %706 = vmatprep.subr.mxu0 0.0
    %707 = vmatpush2.msra.mxu0 0.0
    %708 = vmatprep.subr.mxu0 0.0
    %709 = vmatpush2.msra.mxu0 0.0
    %710 = vmatprep.subr.mxu0 0.0
    %711 = vmatpush2.msra.mxu0 0.0
    %712 = vmatprep.subr.mxu0 0.0
    %713 = vmatpush2.msra.mxu0 0.0
    %714 = vmatprep.subr.mxu0 0.0
    %715 = vmatpush2.msra.mxu0 0.0
    %716 = vmatprep.subr.mxu0 0.0
    %717 = vmatpush2.msra.mxu0 0.0
    %718 = vmatprep.subr.mxu0 0.0
    %719 = vmatpush2.msra.mxu0 0.0
    %720 = vmatprep.subr.mxu0 0.0
    %721 = vmatpush2.msra.mxu0 0.0
    %722 = vmatprep.subr.mxu0 0.0
    %723 = vmatpush2.msra.mxu0 0.0
    %724 = vmatprep.mubr.f32.mxu0 0.0
    %725 = vmatmul.mubr.f32.gmra.mxu0 %v183
    %v726 = vpop.f32.mrf.mxu0
    %v727 = vadd.f32 0.0, %v726
    %v728 = vpop.f32.mrf.mxu0
    %v729 = vadd.f32 0.0, %v728
    %730 = vdwg.mxu0
    %731 = vmatprep.subr.mxu0 %v659
    %732 = vmatpush1.msra.mxu0 %v658
    %733 = vmatprep.subr.mxu0 %v655
    %734 = vmatpush1.msra.mxu0 %v654
    %735 = vmatprep.subr.mxu0 %v651
    %736 = vmatpush1.msra.mxu0 %v650
    %737 = vmatprep.subr.mxu0 %v647
    %738 = vmatpush1.msra.mxu0 %v646
    %739 = vmatprep.subr.mxu0 %v643
    %740 = vmatpush1.msra.mxu0 %v642
    %741 = vmatprep.subr.mxu0 %v639
    %742 = vmatpush1.msra.mxu0 %v638
    %743 = vmatprep.subr.mxu0 %v635
    %744 = vmatpush1.msra.mxu0 %v634
    %745 = vmatprep.subr.mxu0 %v631
    %746 = vmatpush1.msra.mxu0 %v630
    %747 = vmatprep.subr.mxu0 %v627
    %748 = vmatpush1.msra.mxu0 %v626
    %749 = vmatprep.subr.mxu0 %v623
    %750 = vmatpush1.msra.mxu0 %v622
    %751 = vmatprep.subr.mxu0 %v619
    %752 = vmatpush1.msra.mxu0 %v618
    %753 = vmatprep.subr.mxu0 %v615
    %754 = vmatpush1.msra.mxu0 %v614
    %755 = vmatprep.subr.mxu0 %v611
    %756 = vmatpush1.msra.mxu0 %v610
    %757 = vmatprep.subr.mxu0 %v607
    %758 = vmatpush1.msra.mxu0 %v606
    %759 = vmatprep.subr.mxu0 %v603
    %760 = vmatpush1.msra.mxu0 %v602
    %761 = vmatprep.subr.mxu0 %v599
    %762 = vmatpush1.msra.mxu0 %v598
    %763 = vmatprep.subr.mxu0 0.0
    %764 = vmatpush2.msra.mxu0 0.0
    %765 = vmatprep.subr.mxu0 0.0
    %766 = vmatpush2.msra.mxu0 0.0
    %767 = vmatprep.subr.mxu0 0.0
    %768 = vmatpush2.msra.mxu0 0.0
    %769 = vmatprep.subr.mxu0 0.0
    %770 = vmatpush2.msra.mxu0 0.0
    %771 = vmatprep.subr.mxu0 0.0
    %772 = vmatpush2.msra.mxu0 0.0
    %773 = vmatprep.subr.mxu0 0.0
    %774 = vmatpush2.msra.mxu0 0.0
    %775 = vmatprep.subr.mxu0 0.0
    %776 = vmatpush2.msra.mxu0 0.0
    %777 = vmatprep.subr.mxu0 0.0
    %778 = vmatpush2.msra.mxu0 0.0
    %779 = vmatprep.subr.mxu0 0.0
    %780 = vmatpush2.msra.mxu0 0.0
    %781 = vmatprep.subr.mxu0 0.0
    %782 = vmatpush2.msra.mxu0 0.0
    %783 = vmatprep.subr.mxu0 0.0
    %784 = vmatpush2.msra.mxu0 0.0
    %785 = vmatprep.subr.mxu0 0.0
    %786 = vmatpush2.msra.mxu0 0.0
    %787 = vmatprep.subr.mxu0 0.0
    %788 = vmatpush2.msra.mxu0 0.0
    %789 = vmatprep.subr.mxu0 0.0
    %790 = vmatpush2.msra.mxu0 0.0
    %791 = vmatprep.subr.mxu0 0.0
    %792 = vmatpush2.msra.mxu0 0.0
    %793 = vmatprep.subr.mxu0 0.0
    %794 = vmatpush2.msra.mxu0 0.0
    %795 = vmatprep.mubr.f32.mxu0 0.0
    %796 = vmatmul.mubr.f32.gmra.mxu0 %v183
    %v797 = vpop.f32.mrf.mxu0
    %v798 = vadd.f32 0.0, %v797
    %v799 = vpop.f32.mrf.mxu0
    %v800 = vadd.f32 0.0, %v799
    %801 = vdwg.mxu0
    %v802 = vadd.f32 %v521, %v727
    %v803 = vadd.f32 %v523, %v729
    %v804 = vadd.f32 %v592, %v798
    %v805 = vadd.f32 %v594, %v800
    %v806 = vld [vmem:[%s10] sm:$0xf]
    %v808 = vlaneseq
    %v809 = vshrl.u32 %v808, 7
    %v810 = vsub.s32 0, %v809
    %v811 = vrot.slane %v806, %v810
    %v812 = vlaneseq
    %v813 = vshrl.u32 %v812, 7
    %v814 = vsub.s32 1, %v813
    %v815 = vrot.slane %v806, %v814
    %v816 = vlaneseq
    %v817 = vshrl.u32 %v816, 7
    %v818 = vsub.s32 2, %v817
    %v819 = vrot.slane %v806, %v818
    %v820 = vlaneseq
    %v821 = vshrl.u32 %v820, 7
    %v822 = vsub.s32 3, %v821
    %v823 = vrot.slane %v806, %v822
    %v828 = vadd.f32 %v802, %v811
    %v829 = vadd.f32 %v803, %v815
    %v830 = vadd.f32 %v804, %v819
    %v831 = vadd.f32 %v805, %v823
    %v832 = vxor.u32 %v828, 2147483648
    %v833 = vmul.f32 %v832, 1.442695
    %v834 = vpow.pop %v833
    %v835 = vadd.f32 %v834, 1.0
    %v836 = vrcp.pop %v835
    %v837 = vmul.f32 1.0, %v836
    %v838 = vxor.u32 %v829, 2147483648
    %v839 = vmul.f32 %v838, 1.442695
    %v840 = vpow.pop %v839
    %v841 = vadd.f32 %v840, 1.0
    %v842 = vrcp.pop %v841
    %v843 = vmul.f32 1.0, %v842
    %v844 = vtanh.pop %v830
    %v845 = vxor.u32 %v831, 2147483648
    %v846 = vmul.f32 %v845, 1.442695
    %v847 = vpow.pop %v846
    %v848 = vadd.f32 %v847, 1.0
    %v849 = vrcp.pop %v848
    %v850 = vmul.f32 1.0, %v849
    %v851 = vld [vmem:[%s3] sm:$0xff]
    %v852 = vmul.f32 %v843, %v851
    %v853 = vmul.f32 %v837, %v844
    %v854 = vadd.f32 %v852, %v853
    %v855 = vtanh.pop %v854
    %v856 = vmul.f32 %v850, %v855
    %857 = vst [vmem:[#allocation16] sm:$0xff] %v856
    %858 = vst [vmem:[#allocation17] sm:$0xff] %v854
    %v859 = vld [vmem:[%s15] sm:$0xff]
    %v860 = vld [vmem:[%s15 + $0x8] sm:$0xff]
    %v861 = vld [vmem:[%s15 + $0x10] sm:$0xff]
    %v862 = vld [vmem:[%s15 + $0x18] sm:$0xff]
    %v863 = vld [vmem:[%s15 + $0x20] sm:$0xff]
    %v864 = vld [vmem:[%s15 + $0x28] sm:$0xff]
    %v865 = vld [vmem:[%s15 + $0x30] sm:$0xff]
    %v866 = vld [vmem:[%s15 + $0x38] sm:$0xff]
    %v867 = vld [vmem:[%s15 + $0x40] sm:$0xff]
    %v868 = vld [vmem:[%s15 + $0x48] sm:$0xff]
    %v869 = vld [vmem:[%s15 + $0x50] sm:$0xff]
    %v870 = vld [vmem:[%s15 + $0x58] sm:$0xff]
    %v871 = vld [vmem:[%s15 + $0x60] sm:$0xff]
    %v872 = vld [vmem:[%s15 + $0x68] sm:$0xff]
    %v873 = vld [vmem:[%s15 + $0x70] sm:$0xff]
    %v874 = vld [vmem:[%s15 + $0x78] sm:$0xff]
    %v875 = vld [vmem:[%s4] sm:$0xff]
    %v876 = vld [vmem:[#allocation13] sm:$0xff]
    %v877 = vld [vmem:[#allocation13 + $0x8] sm:$0xff]
    %v878 = vld [vmem:[#allocation13 + $0x10] sm:$0xff]
    %v879 = vld [vmem:[#allocation13 + $0x18] sm:$0xff]
    %v880 = vld [vmem:[#allocation13 + $0x20] sm:$0xff]
    %v881 = vld [vmem:[#allocation13 + $0x28] sm:$0xff]
    %v882 = vld [vmem:[#allocation13 + $0x30] sm:$0xff]
    %v883 = vld [vmem:[#allocation13 + $0x38] sm:$0xff]
    %v884 = vld [vmem:[#allocation13 + $0x40] sm:$0xff]
    %v885 = vld [vmem:[#allocation13 + $0x48] sm:$0xff]
    %v886 = vld [vmem:[#allocation13 + $0x50] sm:$0xff]
    %v887 = vld [vmem:[#allocation13 + $0x58] sm:$0xff]
    %v888 = vld [vmem:[#allocation13 + $0x60] sm:$0xff]
    %v889 = vld [vmem:[#allocation13 + $0x68] sm:$0xff]
    %v890 = vld [vmem:[#allocation13 + $0x70] sm:$0xff]
    %v891 = vld [vmem:[#allocation13 + $0x78] sm:$0xff]
    %892 = vmatprep.subr.mxu0 0.0
    %893 = vmatpush1.msra.mxu0 %v891
    %894 = vmatprep.subr.mxu0 0.0
    %895 = vmatpush1.msra.mxu0 %v890
    %896 = vmatprep.subr.mxu0 0.0
    %897 = vmatpush1.msra.mxu0 %v889
    %898 = vmatprep.subr.mxu0 0.0
    %899 = vmatpush1.msra.mxu0 %v888
    %900 = vmatprep.subr.mxu0 0.0
    %901 = vmatpush1.msra.mxu0 %v887
    %902 = vmatprep.subr.mxu0 0.0
    %903 = vmatpush1.msra.mxu0 %v886
    %904 = vmatprep.subr.mxu0 0.0
    %905 = vmatpush1.msra.mxu0 %v885
    %906 = vmatprep.subr.mxu0 0.0
    %907 = vmatpush1.msra.mxu0 %v884
    %908 = vmatprep.subr.mxu0 0.0
    %909 = vmatpush1.msra.mxu0 %v883
    %910 = vmatprep.subr.mxu0 0.0
    %911 = vmatpush1.msra.mxu0 %v882
    %912 = vmatprep.subr.mxu0 0.0
    %913 = vmatpush1.msra.mxu0 %v881
    %914 = vmatprep.subr.mxu0 0.0
    %915 = vmatpush1.msra.mxu0 %v880
    %916 = vmatprep.subr.mxu0 0.0
    %917 = vmatpush1.msra.mxu0 %v879
    %918 = vmatprep.subr.mxu0 0.0
    %919 = vmatpush1.msra.mxu0 %v878
    %920 = vmatprep.subr.mxu0 0.0
    %921 = vmatpush1.msra.mxu0 %v877
    %922 = vmatprep.subr.mxu0 0.0
    %923 = vmatpush1.msra.mxu0 %v876
    %924 = vmatprep.subr.mxu0 0.0
    %925 = vmatpush2.msra.mxu0 0.0
    %926 = vmatprep.subr.mxu0 0.0
    %927 = vmatpush2.msra.mxu0 0.0
    %928 = vmatprep.subr.mxu0 0.0
    %929 = vmatpush2.msra.mxu0 0.0
    %930 = vmatprep.subr.mxu0 0.0
    %931 = vmatpush2.msra.mxu0 0.0
    %932 = vmatprep.subr.mxu0 0.0
    %933 = vmatpush2.msra.mxu0 0.0
    %934 = vmatprep.subr.mxu0 0.0
    %935 = vmatpush2.msra.mxu0 0.0
    %936 = vmatprep.subr.mxu0 0.0
    %937 = vmatpush2.msra.mxu0 0.0
    %938 = vmatprep.subr.mxu0 0.0
    %939 = vmatpush2.msra.mxu0 0.0
    %940 = vmatprep.subr.mxu0 0.0
    %941 = vmatpush2.msra.mxu0 0.0
    %942 = vmatprep.subr.mxu0 0.0
    %943 = vmatpush2.msra.mxu0 0.0
    %944 = vmatprep.subr.mxu0 0.0
    %945 = vmatpush2.msra.mxu0 0.0
    %946 = vmatprep.subr.mxu0 0.0
    %947 = vmatpush2.msra.mxu0 0.0
    %948 = vmatprep.subr.mxu0 0.0
    %949 = vmatpush2.msra.mxu0 0.0
    %950 = vmatprep.subr.mxu0 0.0
    %951 = vmatpush2.msra.mxu0 0.0
    %952 = vmatprep.subr.mxu0 0.0
    %953 = vmatpush2.msra.mxu0 0.0
    %954 = vmatprep.subr.mxu0 0.0
    %955 = vmatpush2.msra.mxu0 0.0
    %956 = vmatprep.mubr.f32.mxu0 0.0
    %957 = vmatmul.mubr.f32.gmra.mxu0 %v875
    %v958 = vpop.f32.mrf.mxu0
    %v959 = vadd.f32 0.0, %v958
    %v960 = vpop.f32.mrf.mxu0
    %961 = vdwg.mxu0
    %962 = vmatprep.subr.mxu0 0.0
    %963 = vmatpush1.msra.mxu0 %v874
    %964 = vmatprep.subr.mxu0 0.0
    %965 = vmatpush1.msra.mxu0 %v873
    %966 = vmatprep.subr.mxu0 0.0
    %967 = vmatpush1.msra.mxu0 %v872
    %968 = vmatprep.subr.mxu0 0.0
    %969 = vmatpush1.msra.mxu0 %v871
    %970 = vmatprep.subr.mxu0 0.0
    %971 = vmatpush1.msra.mxu0 %v870
    %972 = vmatprep.subr.mxu0 0.0
    %973 = vmatpush1.msra.mxu0 %v869
    %974 = vmatprep.subr.mxu0 0.0
    %975 = vmatpush1.msra.mxu0 %v868
    %976 = vmatprep.subr.mxu0 0.0
    %977 = vmatpush1.msra.mxu0 %v867
    %978 = vmatprep.subr.mxu0 0.0
    %979 = vmatpush1.msra.mxu0 %v866
    %980 = vmatprep.subr.mxu0 0.0
    %981 = vmatpush1.msra.mxu0 %v865
    %982 = vmatprep.subr.mxu0 0.0
    %983 = vmatpush1.msra.mxu0 %v864
    %984 = vmatprep.subr.mxu0 0.0
    %985 = vmatpush1.msra.mxu0 %v863
    %986 = vmatprep.subr.mxu0 0.0
    %987 = vmatpush1.msra.mxu0 %v862
    %988 = vmatprep.subr.mxu0 0.0
    %989 = vmatpush1.msra.mxu0 %v861
    %990 = vmatprep.subr.mxu0 0.0
    %991 = vmatpush1.msra.mxu0 %v860
    %992 = vmatprep.subr.mxu0 0.0
    %993 = vmatpush1.msra.mxu0 %v859
    %994 = vmatprep.subr.mxu0 0.0
    %995 = vmatpush2.msra.mxu0 0.0
    %996 = vmatprep.subr.mxu0 0.0
    %997 = vmatpush2.msra.mxu0 0.0
    %998 = vmatprep.subr.mxu0 0.0
    %999 = vmatpush2.msra.mxu0 0.0
    %1000 = vmatprep.subr.mxu0 0.0
    %1001 = vmatpush2.msra.mxu0 0.0
    %1002 = vmatprep.subr.mxu0 0.0
    %1003 = vmatpush2.msra.mxu0 0.0
    %1004 = vmatprep.subr.mxu0 0.0
    %1005 = vmatpush2.msra.mxu0 0.0
    %1006 = vmatprep.subr.mxu0 0.0
    %1007 = vmatpush2.msra.mxu0 0.0
    %1008 = vmatprep.subr.mxu0 0.0
    %1009 = vmatpush2.msra.mxu0 0.0
    %1010 = vmatprep.subr.mxu0 0.0
    %1011 = vmatpush2.msra.mxu0 0.0
    %1012 = vmatprep.subr.mxu0 0.0
    %1013 = vmatpush2.msra.mxu0 0.0
    %1014 = vmatprep.subr.mxu0 0.0
    %1015 = vmatpush2.msra.mxu0 0.0
    %1016 = vmatprep.subr.mxu0 0.0
    %1017 = vmatpush2.msra.mxu0 0.0
    %1018 = vmatprep.subr.mxu0 0.0
    %1019 = vmatpush2.msra.mxu0 0.0
    %1020 = vmatprep.subr.mxu0 0.0
    %1021 = vmatpush2.msra.mxu0 0.0
    %1022 = vmatprep.subr.mxu0 0.0
    %1023 = vmatpush2.msra.mxu0 0.0
    %1024 = vmatprep.subr.mxu0 0.0
    %1025 = vmatpush2.msra.mxu0 0.0
    %1026 = vmatprep.mubr.f32.mxu0 0.0
    %1027 = vmatmul.mubr.f32.gmra.mxu0 %v856
    %v1028 = vpop.f32.mrf.mxu0
    %v1029 = vadd.f32 %v959, %v1028
    %v1030 = vpop.f32.mrf.mxu0
    %1031 = vdwg.mxu0
    %v1032 = vld [vmem:[%s17] sm:$0x1]
    %v1034 = vlaneseq
    %v1035 = vshrl.u32 %v1034, 7
    %v1036 = vsub.s32 0, %v1035
    %v1037 = vrot.slane %v1032, %v1036
    %v1039 = vadd.f32 %v1029, %v1037
    %v1040 = vtanh.pop %v1039
    %1041 = vst [vmem:[#allocation19] sm:$0xff] %v1040
    %v1042 = vld [vmem:[#allocation8] sm:$0xff]
    %v1043 = vld [vmem:[#allocation8 + $0x8] sm:$0xff]
    %v1044 = vld [vmem:[#allocation8 + $0x10] sm:$0xff]
    %v1045 = vld [vmem:[#allocation8 + $0x18] sm:$0xff]
    %v1046 = vld [vmem:[#allocation8 + $0x20] sm:$0xff]
    %v1047 = vld [vmem:[#allocation8 + $0x28] sm:$0xff]
    %v1048 = vld [vmem:[#allocation8 + $0x30] sm:$0xff]
    %v1049 = vld [vmem:[#allocation8 + $0x38] sm:$0xff]
    %v1050 = vld [vmem:[#allocation8 + $0x40] sm:$0xff]
    %v1051 = vld [vmem:[#allocation8 + $0x48] sm:$0xff]
    %v1052 = vld [vmem:[#allocation8 + $0x50] sm:$0xff]
    %v1053 = vld [vmem:[#allocation8 + $0x58] sm:$0xff]
    %v1054 = vld [vmem:[#allocation8 + $0x60] sm:$0xff]
    %v1055 = vld [vmem:[#allocation8 + $0x68] sm:$0xff]
    %v1056 = vld [vmem:[#allocation8 + $0x70] sm:$0xff]
    %v1057 = vld [vmem:[#allocation8 + $0x78] sm:$0xff]
    %v1058 = vld [vmem:[#allocation8 + $0x80] sm:$0xff]
    %v1059 = vld [vmem:[#allocation8 + $0x88] sm:$0xff]
    %v1060 = vld [vmem:[#allocation8 + $0x90] sm:$0xff]
    %v1061 = vld [vmem:[#allocation8 + $0x98] sm:$0xff]
    %v1062 = vld [vmem:[#allocation8 + $0xa0] sm:$0xff]
    %v1063 = vld [vmem:[#allocation8 + $0xa8] sm:$0xff]
    %v1064 = vld [vmem:[#allocation8 + $0xb0] sm:$0xff]
    %v1065 = vld [vmem:[#allocation8 + $0xb8] sm:$0xff]
    %v1066 = vld [vmem:[#allocation8 + $0xc0] sm:$0xff]
    %v1067 = vld [vmem:[#allocation8 + $0xc8] sm:$0xff]
    %v1068 = vld [vmem:[#allocation8 + $0xd0] sm:$0xff]
    %v1069 = vld [vmem:[#allocation8 + $0xd8] sm:$0xff]
    %v1070 = vld [vmem:[#allocation8 + $0xe0] sm:$0xff]
    %v1071 = vld [vmem:[#allocation8 + $0xe8] sm:$0xff]
    %v1072 = vld [vmem:[#allocation8 + $0xf0] sm:$0xff]
    %v1073 = vld [vmem:[#allocation8 + $0xf8] sm:$0xff]
    %v1074 = vld [vmem:[#allocation8 + $0x100] sm:$0xff]
    %v1075 = vld [vmem:[#allocation8 + $0x108] sm:$0xff]
    %v1076 = vld [vmem:[#allocation8 + $0x110] sm:$0xff]
    %v1077 = vld [vmem:[#allocation8 + $0x118] sm:$0xff]
    %v1078 = vld [vmem:[#allocation8 + $0x120] sm:$0xff]
    %v1079 = vld [vmem:[#allocation8 + $0x128] sm:$0xff]
    %v1080 = vld [vmem:[#allocation8 + $0x130] sm:$0xff]
    %v1081 = vld [vmem:[#allocation8 + $0x138] sm:$0xff]
    %v1082 = vld [vmem:[#allocation8 + $0x140] sm:$0xff]
    %v1083 = vld [vmem:[#allocation8 + $0x148] sm:$0xff]
    %v1084 = vld [vmem:[#allocation8 + $0x150] sm:$0xff]
    %v1085 = vld [vmem:[#allocation8 + $0x158] sm:$0xff]
    %v1086 = vld [vmem:[#allocation8 + $0x160] sm:$0xff]
    %v1087 = vld [vmem:[#allocation8 + $0x168] sm:$0xff]
    %v1088 = vld [vmem:[#allocation8 + $0x170] sm:$0xff]
    %v1089 = vld [vmem:[#allocation8 + $0x178] sm:$0xff]
    %v1090 = vld [vmem:[#allocation8 + $0x180] sm:$0xff]
    %v1091 = vld [vmem:[#allocation8 + $0x188] sm:$0xff]
    %v1092 = vld [vmem:[#allocation8 + $0x190] sm:$0xff]
    %v1093 = vld [vmem:[#allocation8 + $0x198] sm:$0xff]
    %v1094 = vld [vmem:[#allocation8 + $0x1a0] sm:$0xff]
    %v1095 = vld [vmem:[#allocation8 + $0x1a8] sm:$0xff]
    %v1096 = vld [vmem:[#allocation8 + $0x1b0] sm:$0xff]
    %v1097 = vld [vmem:[#allocation8 + $0x1b8] sm:$0xff]
    %v1098 = vld [vmem:[#allocation8 + $0x1c0] sm:$0xff]
    %v1099 = vld [vmem:[#allocation8 + $0x1c8] sm:$0xff]
    %v1100 = vld [vmem:[#allocation8 + $0x1d0] sm:$0xff]
    %v1101 = vld [vmem:[#allocation8 + $0x1d8] sm:$0xff]
    %v1102 = vld [vmem:[#allocation8 + $0x1e0] sm:$0xff]
    %v1103 = vld [vmem:[#allocation8 + $0x1e8] sm:$0xff]
    %v1104 = vld [vmem:[#allocation8 + $0x1f0] sm:$0xff]
    %v1105 = vld [vmem:[#allocation8 + $0x1f8] sm:$0xff]
    %v1106 = vld [vmem:[#allocation10] sm:$0xff]
    %v1107 = vld [vmem:[#allocation10 + $0x8] sm:$0xff]
    %v1108 = vld [vmem:[#allocation10 + $0x10] sm:$0xff]
    %v1109 = vld [vmem:[#allocation10 + $0x18] sm:$0xff]
    %v1110 = vld [vmem:[#allocation10 + $0x20] sm:$0xff]
    %v1111 = vld [vmem:[#allocation10 + $0x28] sm:$0xff]
    %v1112 = vld [vmem:[#allocation10 + $0x30] sm:$0xff]
    %v1113 = vld [vmem:[#allocation10 + $0x38] sm:$0xff]
    %v1114 = vld [vmem:[#allocation10 + $0x40] sm:$0xff]
    %v1115 = vld [vmem:[#allocation10 + $0x48] sm:$0xff]
    %v1116 = vld [vmem:[#allocation10 + $0x50] sm:$0xff]
    %v1117 = vld [vmem:[#allocation10 + $0x58] sm:$0xff]
    %v1118 = vld [vmem:[#allocation10 + $0x60] sm:$0xff]
    %v1119 = vld [vmem:[#allocation10 + $0x68] sm:$0xff]
    %v1120 = vld [vmem:[#allocation10 + $0x70] sm:$0xff]
    %v1121 = vld [vmem:[#allocation10 + $0x78] sm:$0xff]
    %v1122 = vld [vmem:[#allocation10 + $0x80] sm:$0xff]
    %v1123 = vld [vmem:[#allocation10 + $0x88] sm:$0xff]
    %v1124 = vld [vmem:[#allocation10 + $0x90] sm:$0xff]
    %v1125 = vld [vmem:[#allocation10 + $0x98] sm:$0xff]
    %v1126 = vld [vmem:[#allocation10 + $0xa0] sm:$0xff]
    %v1127 = vld [vmem:[#allocation10 + $0xa8] sm:$0xff]
    %v1128 = vld [vmem:[#allocation10 + $0xb0] sm:$0xff]
    %v1129 = vld [vmem:[#allocation10 + $0xb8] sm:$0xff]
    %v1130 = vld [vmem:[#allocation10 + $0xc0] sm:$0xff]
    %v1131 = vld [vmem:[#allocation10 + $0xc8] sm:$0xff]
    %v1132 = vld [vmem:[#allocation10 + $0xd0] sm:$0xff]
    %v1133 = vld [vmem:[#allocation10 + $0xd8] sm:$0xff]
    %v1134 = vld [vmem:[#allocation10 + $0xe0] sm:$0xff]
    %v1135 = vld [vmem:[#allocation10 + $0xe8] sm:$0xff]
    %v1136 = vld [vmem:[#allocation10 + $0xf0] sm:$0xff]
    %v1137 = vld [vmem:[#allocation10 + $0xf8] sm:$0xff]
    %v1138 = vld [vmem:[#allocation10 + $0x100] sm:$0xff]
    %v1139 = vld [vmem:[#allocation10 + $0x108] sm:$0xff]
    %v1140 = vld [vmem:[#allocation10 + $0x110] sm:$0xff]
    %v1141 = vld [vmem:[#allocation10 + $0x118] sm:$0xff]
    %v1142 = vld [vmem:[#allocation10 + $0x120] sm:$0xff]
    %v1143 = vld [vmem:[#allocation10 + $0x128] sm:$0xff]
    %v1144 = vld [vmem:[#allocation10 + $0x130] sm:$0xff]
    %v1145 = vld [vmem:[#allocation10 + $0x138] sm:$0xff]
    %v1146 = vld [vmem:[#allocation10 + $0x140] sm:$0xff]
    %v1147 = vld [vmem:[#allocation10 + $0x148] sm:$0xff]
    %v1148 = vld [vmem:[#allocation10 + $0x150] sm:$0xff]
    %v1149 = vld [vmem:[#allocation10 + $0x158] sm:$0xff]
    %v1150 = vld [vmem:[#allocation10 + $0x160] sm:$0xff]
    %v1151 = vld [vmem:[#allocation10 + $0x168] sm:$0xff]
    %v1152 = vld [vmem:[#allocation10 + $0x170] sm:$0xff]
    %v1153 = vld [vmem:[#allocation10 + $0x178] sm:$0xff]
    %v1154 = vld [vmem:[#allocation10 + $0x180] sm:$0xff]
    %v1155 = vld [vmem:[#allocation10 + $0x188] sm:$0xff]
    %v1156 = vld [vmem:[#allocation10 + $0x190] sm:$0xff]
    %v1157 = vld [vmem:[#allocation10 + $0x198] sm:$0xff]
    %v1158 = vld [vmem:[#allocation10 + $0x1a0] sm:$0xff]
    %v1159 = vld [vmem:[#allocation10 + $0x1a8] sm:$0xff]
    %v1160 = vld [vmem:[#allocation10 + $0x1b0] sm:$0xff]
    %v1161 = vld [vmem:[#allocation10 + $0x1b8] sm:$0xff]
    %v1162 = vld [vmem:[#allocation10 + $0x1c0] sm:$0xff]
    %v1163 = vld [vmem:[#allocation10 + $0x1c8] sm:$0xff]
    %v1164 = vld [vmem:[#allocation10 + $0x1d0] sm:$0xff]
    %v1165 = vld [vmem:[#allocation10 + $0x1d8] sm:$0xff]
    %v1166 = vld [vmem:[#allocation10 + $0x1e0] sm:$0xff]
    %v1167 = vld [vmem:[#allocation10 + $0x1e8] sm:$0xff]
    %v1168 = vld [vmem:[#allocation10 + $0x1f0] sm:$0xff]
    %v1169 = vld [vmem:[#allocation10 + $0x1f8] sm:$0xff]
    %1170 = vmatprep.subr.mxu0 %v1167
    %1171 = vmatpush1.msra.mxu0 %v1166
    %1172 = vmatprep.subr.mxu0 %v1163
    %1173 = vmatpush1.msra.mxu0 %v1162
    %1174 = vmatprep.subr.mxu0 %v1159
    %1175 = vmatpush1.msra.mxu0 %v1158
    %1176 = vmatprep.subr.mxu0 %v1155
    %1177 = vmatpush1.msra.mxu0 %v1154
    %1178 = vmatprep.subr.mxu0 %v1151
    %1179 = vmatpush1.msra.mxu0 %v1150
    %1180 = vmatprep.subr.mxu0 %v1147
    %1181 = vmatpush1.msra.mxu0 %v1146
    %1182 = vmatprep.subr.mxu0 %v1143
    %1183 = vmatpush1.msra.mxu0 %v1142
    %1184 = vmatprep.subr.mxu0 %v1139
    %1185 = vmatpush1.msra.mxu0 %v1138
    %1186 = vmatprep.subr.mxu0 %v1135
    %1187 = vmatpush1.msra.mxu0 %v1134
    %1188 = vmatprep.subr.mxu0 %v1131
    %1189 = vmatpush1.msra.mxu0 %v1130
    %1190 = vmatprep.subr.mxu0 %v1127
    %1191 = vmatpush1.msra.mxu0 %v1126
    %1192 = vmatprep.subr.mxu0 %v1123
    %1193 = vmatpush1.msra.mxu0 %v1122
    %1194 = vmatprep.subr.mxu0 %v1119
    %1195 = vmatpush1.msra.mxu0 %v1118
    %1196 = vmatprep.subr.mxu0 %v1115
    %1197 = vmatpush1.msra.mxu0 %v1114
    %1198 = vmatprep.subr.mxu0 %v1111
    %1199 = vmatpush1.msra.mxu0 %v1110
    %1200 = vmatprep.subr.mxu0 %v1107
    %1201 = vmatpush1.msra.mxu0 %v1106
    %1202 = vmatprep.subr.mxu0 0.0
    %1203 = vmatpush2.msra.mxu0 0.0
    %1204 = vmatprep.subr.mxu0 0.0
    %1205 = vmatpush2.msra.mxu0 0.0
    %1206 = vmatprep.subr.mxu0 0.0
    %1207 = vmatpush2.msra.mxu0 0.0
    %1208 = vmatprep.subr.mxu0 0.0
    %1209 = vmatpush2.msra.mxu0 0.0
    %1210 = vmatprep.subr.mxu0 0.0
    %1211 = vmatpush2.msra.mxu0 0.0
    %1212 = vmatprep.subr.mxu0 0.0
    %1213 = vmatpush2.msra.mxu0 0.0
    %1214 = vmatprep.subr.mxu0 0.0
    %1215 = vmatpush2.msra.mxu0 0.0
    %1216 = vmatprep.subr.mxu0 0.0
    %1217 = vmatpush2.msra.mxu0 0.0
    %1218 = vmatprep.subr.mxu0 0.0
    %1219 = vmatpush2.msra.mxu0 0.0
    %1220 = vmatprep.subr.mxu0 0.0
    %1221 = vmatpush2.msra.mxu0 0.0
    %1222 = vmatprep.subr.mxu0 0.0
    %1223 = vmatpush2.msra.mxu0 0.0
    %1224 = vmatprep.subr.mxu0 0.0
    %1225 = vmatpush2.msra.mxu0 0.0
    %1226 = vmatprep.subr.mxu0 0.0
    %1227 = vmatpush2.msra.mxu0 0.0
    %1228 = vmatprep.subr.mxu0 0.0
    %1229 = vmatpush2.msra.mxu0 0.0
    %1230 = vmatprep.subr.mxu0 0.0
    %1231 = vmatpush2.msra.mxu0 0.0
    %1232 = vmatprep.subr.mxu0 0.0
    %1233 = vmatpush2.msra.mxu0 0.0
    %1234 = vmatprep.mubr.f32.mxu0 0.0
    %1235 = vmatmul.mubr.f32.gmra.mxu0 %v183
    %v1236 = vpop.f32.mrf.mxu0
    %v1237 = vadd.f32 0.0, %v1236
    %v1238 = vpop.f32.mrf.mxu0
    %v1239 = vadd.f32 0.0, %v1238
    %1240 = vdwg.mxu0
    %1241 = vmatprep.subr.mxu0 %v1169
    %1242 = vmatpush1.msra.mxu0 %v1168
    %1243 = vmatprep.subr.mxu0 %v1165
    %1244 = vmatpush1.msra.mxu0 %v1164
    %1245 = vmatprep.subr.mxu0 %v1161
    %1246 = vmatpush1.msra.mxu0 %v1160
    %1247 = vmatprep.subr.mxu0 %v1157
    %1248 = vmatpush1.msra.mxu0 %v1156
    %1249 = vmatprep.subr.mxu0 %v1153
    %1250 = vmatpush1.msra.mxu0 %v1152
    %1251 = vmatprep.subr.mxu0 %v1149
    %1252 = vmatpush1.msra.mxu0 %v1148
    %1253 = vmatprep.subr.mxu0 %v1145
    %1254 = vmatpush1.msra.mxu0 %v1144
    %1255 = vmatprep.subr.mxu0 %v1141
    %1256 = vmatpush1.msra.mxu0 %v1140
    %1257 = vmatprep.subr.mxu0 %v1137
    %1258 = vmatpush1.msra.mxu0 %v1136
    %1259 = vmatprep.subr.mxu0 %v1133
    %1260 = vmatpush1.msra.mxu0 %v1132
    %1261 = vmatprep.subr.mxu0 %v1129
    %1262 = vmatpush1.msra.mxu0 %v1128
    %1263 = vmatprep.subr.mxu0 %v1125
    %1264 = vmatpush1.msra.mxu0 %v1124
    %1265 = vmatprep.subr.mxu0 %v1121
    %1266 = vmatpush1.msra.mxu0 %v1120
    %1267 = vmatprep.subr.mxu0 %v1117
    %1268 = vmatpush1.msra.mxu0 %v1116
    %1269 = vmatprep.subr.mxu0 %v1113
    %1270 = vmatpush1.msra.mxu0 %v1112
    %1271 = vmatprep.subr.mxu0 %v1109
    %1272 = vmatpush1.msra.mxu0 %v1108
    %1273 = vmatprep.subr.mxu0 0.0
    %1274 = vmatpush2.msra.mxu0 0.0
    %1275 = vmatprep.subr.mxu0 0.0
    %1276 = vmatpush2.msra.mxu0 0.0
    %1277 = vmatprep.subr.mxu0 0.0
    %1278 = vmatpush2.msra.mxu0 0.0
    %1279 = vmatprep.subr.mxu0 0.0
    %1280 = vmatpush2.msra.mxu0 0.0
    %1281 = vmatprep.subr.mxu0 0.0
    %1282 = vmatpush2.msra.mxu0 0.0
    %1283 = vmatprep.subr.mxu0 0.0
    %1284 = vmatpush2.msra.mxu0 0.0
    %1285 = vmatprep.subr.mxu0 0.0
    %1286 = vmatpush2.msra.mxu0 0.0
    %1287 = vmatprep.subr.mxu0 0.0
    %1288 = vmatpush2.msra.mxu0 0.0
    %1289 = vmatprep.subr.mxu0 0.0
    %1290 = vmatpush2.msra.mxu0 0.0
    %1291 = vmatprep.subr.mxu0 0.0
    %1292 = vmatpush2.msra.mxu0 0.0
    %1293 = vmatprep.subr.mxu0 0.0
    %1294 = vmatpush2.msra.mxu0 0.0
    %1295 = vmatprep.subr.mxu0 0.0
    %1296 = vmatpush2.msra.mxu0 0.0
    %1297 = vmatprep.subr.mxu0 0.0
    %1298 = vmatpush2.msra.mxu0 0.0
    %1299 = vmatprep.subr.mxu0 0.0
    %1300 = vmatpush2.msra.mxu0 0.0
    %1301 = vmatprep.subr.mxu0 0.0
    %1302 = vmatpush2.msra.mxu0 0.0
    %1303 = vmatprep.subr.mxu0 0.0
    %1304 = vmatpush2.msra.mxu0 0.0
    %1305 = vmatprep.mubr.f32.mxu0 0.0
    %1306 = vmatmul.mubr.f32.gmra.mxu0 %v183
    %v1307 = vpop.f32.mrf.mxu0
    %v1308 = vadd.f32 0.0, %v1307
    %v1309 = vpop.f32.mrf.mxu0
    %v1310 = vadd.f32 0.0, %v1309
    %1311 = vdwg.mxu0
    %1312 = vmatprep.subr.mxu0 %v1103
    %1313 = vmatpush1.msra.mxu0 %v1102
    %1314 = vmatprep.subr.mxu0 %v1099
    %1315 = vmatpush1.msra.mxu0 %v1098
    %1316 = vmatprep.subr.mxu0 %v1095
    %1317 = vmatpush1.msra.mxu0 %v1094
    %1318 = vmatprep.subr.mxu0 %v1091
    %1319 = vmatpush1.msra.mxu0 %v1090
    %1320 = vmatprep.subr.mxu0 %v1087
    %1321 = vmatpush1.msra.mxu0 %v1086
    %1322 = vmatprep.subr.mxu0 %v1083
    %1323 = vmatpush1.msra.mxu0 %v1082
    %1324 = vmatprep.subr.mxu0 %v1079
    %1325 = vmatpush1.msra.mxu0 %v1078
    %1326 = vmatprep.subr.mxu0 %v1075
    %1327 = vmatpush1.msra.mxu0 %v1074
    %1328 = vmatprep.subr.mxu0 %v1071
    %1329 = vmatpush1.msra.mxu0 %v1070
    %1330 = vmatprep.subr.mxu0 %v1067
    %1331 = vmatpush1.msra.mxu0 %v1066
    %1332 = vmatprep.subr.mxu0 %v1063
    %1333 = vmatpush1.msra.mxu0 %v1062
    %1334 = vmatprep.subr.mxu0 %v1059
    %1335 = vmatpush1.msra.mxu0 %v1058
    %1336 = vmatprep.subr.mxu0 %v1055
    %1337 = vmatpush1.msra.mxu0 %v1054
    %1338 = vmatprep.subr.mxu0 %v1051
    %1339 = vmatpush1.msra.mxu0 %v1050
    %1340 = vmatprep.subr.mxu0 %v1047
    %1341 = vmatpush1.msra.mxu0 %v1046
    %1342 = vmatprep.subr.mxu0 %v1043
    %1343 = vmatpush1.msra.mxu0 %v1042
    %1344 = vmatprep.subr.mxu0 0.0
    %1345 = vmatpush2.msra.mxu0 0.0
    %1346 = vmatprep.subr.mxu0 0.0
    %1347 = vmatpush2.msra.mxu0 0.0
    %1348 = vmatprep.subr.mxu0 0.0
    %1349 = vmatpush2.msra.mxu0 0.0
    %1350 = vmatprep.subr.mxu0 0.0
    %1351 = vmatpush2.msra.mxu0 0.0
    %1352 = vmatprep.subr.mxu0 0.0
    %1353 = vmatpush2.msra.mxu0 0.0
    %1354 = vmatprep.subr.mxu0 0.0
    %1355 = vmatpush2.msra.mxu0 0.0
    %1356 = vmatprep.subr.mxu0 0.0
    %1357 = vmatpush2.msra.mxu0 0.0
    %1358 = vmatprep.subr.mxu0 0.0
    %1359 = vmatpush2.msra.mxu0 0.0
    %1360 = vmatprep.subr.mxu0 0.0
    %1361 = vmatpush2.msra.mxu0 0.0
    %1362 = vmatprep.subr.mxu0 0.0
    %1363 = vmatpush2.msra.mxu0 0.0
    %1364 = vmatprep.subr.mxu0 0.0
    %1365 = vmatpush2.msra.mxu0 0.0
    %1366 = vmatprep.subr.mxu0 0.0
    %1367 = vmatpush2.msra.mxu0 0.0
    %1368 = vmatprep.subr.mxu0 0.0
    %1369 = vmatpush2.msra.mxu0 0.0
    %1370 = vmatprep.subr.mxu0 0.0
    %1371 = vmatpush2.msra.mxu0 0.0
    %1372 = vmatprep.subr.mxu0 0.0
    %1373 = vmatpush2.msra.mxu0 0.0
    %1374 = vmatprep.subr.mxu0 0.0
    %1375 = vmatpush2.msra.mxu0 0.0
    %1376 = vmatprep.mubr.f32.mxu0 0.0
    %1377 = vmatmul.mubr.f32.gmra.mxu0 %v181
    %v1378 = vpop.f32.mrf.mxu0
    %v1379 = vadd.f32 %v1237, %v1378
    %v1380 = vpop.f32.mrf.mxu0
    %v1381 = vadd.f32 %v1239, %v1380
    %1382 = vdwg.mxu0
    %1383 = vmatprep.subr.mxu0 %v1105
    %1384 = vmatpush1.msra.mxu0 %v1104
    %1385 = vmatprep.subr.mxu0 %v1101
    %1386 = vmatpush1.msra.mxu0 %v1100
    %1387 = vmatprep.subr.mxu0 %v1097
    %1388 = vmatpush1.msra.mxu0 %v1096
    %1389 = vmatprep.subr.mxu0 %v1093
    %1390 = vmatpush1.msra.mxu0 %v1092
    %1391 = vmatprep.subr.mxu0 %v1089
    %1392 = vmatpush1.msra.mxu0 %v1088
    %1393 = vmatprep.subr.mxu0 %v1085
    %1394 = vmatpush1.msra.mxu0 %v1084
    %1395 = vmatprep.subr.mxu0 %v1081
    %1396 = vmatpush1.msra.mxu0 %v1080
    %1397 = vmatprep.subr.mxu0 %v1077
    %1398 = vmatpush1.msra.mxu0 %v1076
    %1399 = vmatprep.subr.mxu0 %v1073
    %1400 = vmatpush1.msra.mxu0 %v1072
    %1401 = vmatprep.subr.mxu0 %v1069
    %1402 = vmatpush1.msra.mxu0 %v1068
    %1403 = vmatprep.subr.mxu0 %v1065
    %1404 = vmatpush1.msra.mxu0 %v1064
    %1405 = vmatprep.subr.mxu0 %v1061
    %1406 = vmatpush1.msra.mxu0 %v1060
    %1407 = vmatprep.subr.mxu0 %v1057
    %1408 = vmatpush1.msra.mxu0 %v1056
    %1409 = vmatprep.subr.mxu0 %v1053
    %1410 = vmatpush1.msra.mxu0 %v1052
    %1411 = vmatprep.subr.mxu0 %v1049
    %1412 = vmatpush1.msra.mxu0 %v1048
    %1413 = vmatprep.subr.mxu0 %v1045
    %1414 = vmatpush1.msra.mxu0 %v1044
    %1415 = vmatprep.subr.mxu0 0.0
    %1416 = vmatpush2.msra.mxu0 0.0
    %1417 = vmatprep.subr.mxu0 0.0
    %1418 = vmatpush2.msra.mxu0 0.0
    %1419 = vmatprep.subr.mxu0 0.0
    %1420 = vmatpush2.msra.mxu0 0.0
    %1421 = vmatprep.subr.mxu0 0.0
    %1422 = vmatpush2.msra.mxu0 0.0
    %1423 = vmatprep.subr.mxu0 0.0
    %1424 = vmatpush2.msra.mxu0 0.0
    %1425 = vmatprep.subr.mxu0 0.0
    %1426 = vmatpush2.msra.mxu0 0.0
    %1427 = vmatprep.subr.mxu0 0.0
    %1428 = vmatpush2.msra.mxu0 0.0
    %1429 = vmatprep.subr.mxu0 0.0
    %1430 = vmatpush2.msra.mxu0 0.0
    %1431 = vmatprep.subr.mxu0 0.0
    %1432 = vmatpush2.msra.mxu0 0.0
    %1433 = vmatprep.subr.mxu0 0.0
    %1434 = vmatpush2.msra.mxu0 0.0
    %1435 = vmatprep.subr.mxu0 0.0
    %1436 = vmatpush2.msra.mxu0 0.0
    %1437 = vmatprep.subr.mxu0 0.0
    %1438 = vmatpush2.msra.mxu0 0.0
    %1439 = vmatprep.subr.mxu0 0.0
    %1440 = vmatpush2.msra.mxu0 0.0
    %1441 = vmatprep.subr.mxu0 0.0
    %1442 = vmatpush2.msra.mxu0 0.0
    %1443 = vmatprep.subr.mxu0 0.0
    %1444 = vmatpush2.msra.mxu0 0.0
    %1445 = vmatprep.subr.mxu0 0.0
    %1446 = vmatpush2.msra.mxu0 0.0
    %1447 = vmatprep.mubr.f32.mxu0 0.0
    %1448 = vmatmul.mubr.f32.gmra.mxu0 %v181
    %v1449 = vpop.f32.mrf.mxu0
    %v1450 = vadd.f32 %v1308, %v1449
    %v1451 = vpop.f32.mrf.mxu0
    %v1452 = vadd.f32 %v1310, %v1451
    %1453 = vdwg.mxu0
    %v1454 = vld [vmem:[%s5] sm:$0xff]
    %v1455 = vld [vmem:[#allocation11] sm:$0xff]
    %v1456 = vld [vmem:[#allocation11 + $0x8] sm:$0xff]
    %v1457 = vld [vmem:[#allocation11 + $0x10] sm:$0xff]
    %v1458 = vld [vmem:[#allocation11 + $0x18] sm:$0xff]
    %v1459 = vld [vmem:[#allocation11 + $0x20] sm:$0xff]
    %v1460 = vld [vmem:[#allocation11 + $0x28] sm:$0xff]
    %v1461 = vld [vmem:[#allocation11 + $0x30] sm:$0xff]
    %v1462 = vld [vmem:[#allocation11 + $0x38] sm:$0xff]
    %v1463 = vld [vmem:[#allocation11 + $0x40] sm:$0xff]
    %v1464 = vld [vmem:[#allocation11 + $0x48] sm:$0xff]
    %v1465 = vld [vmem:[#allocation11 + $0x50] sm:$0xff]
    %v1466 = vld [vmem:[#allocation11 + $0x58] sm:$0xff]
    %v1467 = vld [vmem:[#allocation11 + $0x60] sm:$0xff]
    %v1468 = vld [vmem:[#allocation11 + $0x68] sm:$0xff]
    %v1469 = vld [vmem:[#allocation11 + $0x70] sm:$0xff]
    %v1470 = vld [vmem:[#allocation11 + $0x78] sm:$0xff]
    %v1471 = vld [vmem:[#allocation11 + $0x80] sm:$0xff]
    %v1472 = vld [vmem:[#allocation11 + $0x88] sm:$0xff]
    %v1473 = vld [vmem:[#allocation11 + $0x90] sm:$0xff]
    %v1474 = vld [vmem:[#allocation11 + $0x98] sm:$0xff]
    %v1475 = vld [vmem:[#allocation11 + $0xa0] sm:$0xff]
    %v1476 = vld [vmem:[#allocation11 + $0xa8] sm:$0xff]
    %v1477 = vld [vmem:[#allocation11 + $0xb0] sm:$0xff]
    %v1478 = vld [vmem:[#allocation11 + $0xb8] sm:$0xff]
    %v1479 = vld [vmem:[#allocation11 + $0xc0] sm:$0xff]
    %v1480 = vld [vmem:[#allocation11 + $0xc8] sm:$0xff]
    %v1481 = vld [vmem:[#allocation11 + $0xd0] sm:$0xff]
    %v1482 = vld [vmem:[#allocation11 + $0xd8] sm:$0xff]
    %v1483 = vld [vmem:[#allocation11 + $0xe0] sm:$0xff]
    %v1484 = vld [vmem:[#allocation11 + $0xe8] sm:$0xff]
    %v1485 = vld [vmem:[#allocation11 + $0xf0] sm:$0xff]
    %v1486 = vld [vmem:[#allocation11 + $0xf8] sm:$0xff]
    %v1487 = vld [vmem:[#allocation11 + $0x100] sm:$0xff]
    %v1488 = vld [vmem:[#allocation11 + $0x108] sm:$0xff]
    %v1489 = vld [vmem:[#allocation11 + $0x110] sm:$0xff]
    %v1490 = vld [vmem:[#allocation11 + $0x118] sm:$0xff]
    %v1491 = vld [vmem:[#allocation11 + $0x120] sm:$0xff]
    %v1492 = vld [vmem:[#allocation11 + $0x128] sm:$0xff]
    %v1493 = vld [vmem:[#allocation11 + $0x130] sm:$0xff]
    %v1494 = vld [vmem:[#allocation11 + $0x138] sm:$0xff]
    %v1495 = vld [vmem:[#allocation11 + $0x140] sm:$0xff]
    %v1496 = vld [vmem:[#allocation11 + $0x148] sm:$0xff]
    %v1497 = vld [vmem:[#allocation11 + $0x150] sm:$0xff]
    %v1498 = vld [vmem:[#allocation11 + $0x158] sm:$0xff]
    %v1499 = vld [vmem:[#allocation11 + $0x160] sm:$0xff]
    %v1500 = vld [vmem:[#allocation11 + $0x168] sm:$0xff]
    %v1501 = vld [vmem:[#allocation11 + $0x170] sm:$0xff]
    %v1502 = vld [vmem:[#allocation11 + $0x178] sm:$0xff]
    %v1503 = vld [vmem:[#allocation11 + $0x180] sm:$0xff]
    %v1504 = vld [vmem:[#allocation11 + $0x188] sm:$0xff]
    %v1505 = vld [vmem:[#allocation11 + $0x190] sm:$0xff]
    %v1506 = vld [vmem:[#allocation11 + $0x198] sm:$0xff]
    %v1507 = vld [vmem:[#allocation11 + $0x1a0] sm:$0xff]
    %v1508 = vld [vmem:[#allocation11 + $0x1a8] sm:$0xff]
    %v1509 = vld [vmem:[#allocation11 + $0x1b0] sm:$0xff]
    %v1510 = vld [vmem:[#allocation11 + $0x1b8] sm:$0xff]
    %v1511 = vld [vmem:[#allocation11 + $0x1c0] sm:$0xff]
    %v1512 = vld [vmem:[#allocation11 + $0x1c8] sm:$0xff]
    %v1513 = vld [vmem:[#allocation11 + $0x1d0] sm:$0xff]
    %v1514 = vld [vmem:[#allocation11 + $0x1d8] sm:$0xff]
    %v1515 = vld [vmem:[#allocation11 + $0x1e0] sm:$0xff]
    %v1516 = vld [vmem:[#allocation11 + $0x1e8] sm:$0xff]
    %v1517 = vld [vmem:[#allocation11 + $0x1f0] sm:$0xff]
    %v1518 = vld [vmem:[#allocation11 + $0x1f8] sm:$0xff]
    %1519 = vmatprep.subr.mxu0 %v1516
    %1520 = vmatpush1.msra.mxu0 %v1515
    %1521 = vmatprep.subr.mxu0 %v1512
    %1522 = vmatpush1.msra.mxu0 %v1511
    %1523 = vmatprep.subr.mxu0 %v1508
    %1524 = vmatpush1.msra.mxu0 %v1507
    %1525 = vmatprep.subr.mxu0 %v1504
    %1526 = vmatpush1.msra.mxu0 %v1503
    %1527 = vmatprep.subr.mxu0 %v1500
    %1528 = vmatpush1.msra.mxu0 %v1499
    %1529 = vmatprep.subr.mxu0 %v1496
    %1530 = vmatpush1.msra.mxu0 %v1495
    %1531 = vmatprep.subr.mxu0 %v1492
    %1532 = vmatpush1.msra.mxu0 %v1491
    %1533 = vmatprep.subr.mxu0 %v1488
    %1534 = vmatpush1.msra.mxu0 %v1487
    %1535 = vmatprep.subr.mxu0 %v1484
    %1536 = vmatpush1.msra.mxu0 %v1483
    %1537 = vmatprep.subr.mxu0 %v1480
    %1538 = vmatpush1.msra.mxu0 %v1479
    %1539 = vmatprep.subr.mxu0 %v1476
    %1540 = vmatpush1.msra.mxu0 %v1475
    %1541 = vmatprep.subr.mxu0 %v1472
    %1542 = vmatpush1.msra.mxu0 %v1471
    %1543 = vmatprep.subr.mxu0 %v1468
    %1544 = vmatpush1.msra.mxu0 %v1467
    %1545 = vmatprep.subr.mxu0 %v1464
    %1546 = vmatpush1.msra.mxu0 %v1463
    %1547 = vmatprep.subr.mxu0 %v1460
    %1548 = vmatpush1.msra.mxu0 %v1459
    %1549 = vmatprep.subr.mxu0 %v1456
    %1550 = vmatpush1.msra.mxu0 %v1455
    %1551 = vmatprep.subr.mxu0 0.0
    %1552 = vmatpush2.msra.mxu0 0.0
    %1553 = vmatprep.subr.mxu0 0.0
    %1554 = vmatpush2.msra.mxu0 0.0
    %1555 = vmatprep.subr.mxu0 0.0
    %1556 = vmatpush2.msra.mxu0 0.0
    %1557 = vmatprep.subr.mxu0 0.0
    %1558 = vmatpush2.msra.mxu0 0.0
    %1559 = vmatprep.subr.mxu0 0.0
    %1560 = vmatpush2.msra.mxu0 0.0
    %1561 = vmatprep.subr.mxu0 0.0
    %1562 = vmatpush2.msra.mxu0 0.0
    %1563 = vmatprep.subr.mxu0 0.0
    %1564 = vmatpush2.msra.mxu0 0.0
    %1565 = vmatprep.subr.mxu0 0.0
    %1566 = vmatpush2.msra.mxu0 0.0
    %1567 = vmatprep.subr.mxu0 0.0
    %1568 = vmatpush2.msra.mxu0 0.0
    %1569 = vmatprep.subr.mxu0 0.0
    %1570 = vmatpush2.msra.mxu0 0.0
    %1571 = vmatprep.subr.mxu0 0.0
    %1572 = vmatpush2.msra.mxu0 0.0
    %1573 = vmatprep.subr.mxu0 0.0
    %1574 = vmatpush2.msra.mxu0 0.0
    %1575 = vmatprep.subr.mxu0 0.0
    %1576 = vmatpush2.msra.mxu0 0.0
    %1577 = vmatprep.subr.mxu0 0.0
    %1578 = vmatpush2.msra.mxu0 0.0
    %1579 = vmatprep.subr.mxu0 0.0
    %1580 = vmatpush2.msra.mxu0 0.0
    %1581 = vmatprep.subr.mxu0 0.0
    %1582 = vmatpush2.msra.mxu0 0.0
    %1583 = vmatprep.mubr.f32.mxu0 0.0
    %1584 = vmatmul.mubr.f32.gmra.mxu0 %v1454
    %v1585 = vpop.f32.mrf.mxu0
    %v1586 = vadd.f32 0.0, %v1585
    %v1587 = vpop.f32.mrf.mxu0
    %v1588 = vadd.f32 0.0, %v1587
    %1589 = vdwg.mxu0
    %1590 = vmatprep.subr.mxu0 %v1518
    %1591 = vmatpush1.msra.mxu0 %v1517
    %1592 = vmatprep.subr.mxu0 %v1514
    %1593 = vmatpush1.msra.mxu0 %v1513
    %1594 = vmatprep.subr.mxu0 %v1510
    %1595 = vmatpush1.msra.mxu0 %v1509
    %1596 = vmatprep.subr.mxu0 %v1506
    %1597 = vmatpush1.msra.mxu0 %v1505
    %1598 = vmatprep.subr.mxu0 %v1502
    %1599 = vmatpush1.msra.mxu0 %v1501
    %1600 = vmatprep.subr.mxu0 %v1498
    %1601 = vmatpush1.msra.mxu0 %v1497
    %1602 = vmatprep.subr.mxu0 %v1494
    %1603 = vmatpush1.msra.mxu0 %v1493
    %1604 = vmatprep.subr.mxu0 %v1490
    %1605 = vmatpush1.msra.mxu0 %v1489
    %1606 = vmatprep.subr.mxu0 %v1486
    %1607 = vmatpush1.msra.mxu0 %v1485
    %1608 = vmatprep.subr.mxu0 %v1482
    %1609 = vmatpush1.msra.mxu0 %v1481
    %1610 = vmatprep.subr.mxu0 %v1478
    %1611 = vmatpush1.msra.mxu0 %v1477
    %1612 = vmatprep.subr.mxu0 %v1474
    %1613 = vmatpush1.msra.mxu0 %v1473
    %1614 = vmatprep.subr.mxu0 %v1470
    %1615 = vmatpush1.msra.mxu0 %v1469
    %1616 = vmatprep.subr.mxu0 %v1466
    %1617 = vmatpush1.msra.mxu0 %v1465
    %1618 = vmatprep.subr.mxu0 %v1462
    %1619 = vmatpush1.msra.mxu0 %v1461
    %1620 = vmatprep.subr.mxu0 %v1458
    %1621 = vmatpush1.msra.mxu0 %v1457
    %1622 = vmatprep.subr.mxu0 0.0
    %1623 = vmatpush2.msra.mxu0 0.0
    %1624 = vmatprep.subr.mxu0 0.0
    %1625 = vmatpush2.msra.mxu0 0.0
    %1626 = vmatprep.subr.mxu0 0.0
    %1627 = vmatpush2.msra.mxu0 0.0
    %1628 = vmatprep.subr.mxu0 0.0
    %1629 = vmatpush2.msra.mxu0 0.0
    %1630 = vmatprep.subr.mxu0 0.0
    %1631 = vmatpush2.msra.mxu0 0.0
    %1632 = vmatprep.subr.mxu0 0.0
    %1633 = vmatpush2.msra.mxu0 0.0
    %1634 = vmatprep.subr.mxu0 0.0
    %1635 = vmatpush2.msra.mxu0 0.0
    %1636 = vmatprep.subr.mxu0 0.0
    %1637 = vmatpush2.msra.mxu0 0.0
    %1638 = vmatprep.subr.mxu0 0.0
    %1639 = vmatpush2.msra.mxu0 0.0
    %1640 = vmatprep.subr.mxu0 0.0
    %1641 = vmatpush2.msra.mxu0 0.0
    %1642 = vmatprep.subr.mxu0 0.0
    %1643 = vmatpush2.msra.mxu0 0.0
    %1644 = vmatprep.subr.mxu0 0.0
    %1645 = vmatpush2.msra.mxu0 0.0
    %1646 = vmatprep.subr.mxu0 0.0
    %1647 = vmatpush2.msra.mxu0 0.0
    %1648 = vmatprep.subr.mxu0 0.0
    %1649 = vmatpush2.msra.mxu0 0.0
    %1650 = vmatprep.subr.mxu0 0.0
    %1651 = vmatpush2.msra.mxu0 0.0
    %1652 = vmatprep.subr.mxu0 0.0
    %1653 = vmatpush2.msra.mxu0 0.0
    %1654 = vmatprep.mubr.f32.mxu0 0.0
    %1655 = vmatmul.mubr.f32.gmra.mxu0 %v1454
    %v1656 = vpop.f32.mrf.mxu0
    %v1657 = vadd.f32 0.0, %v1656
    %v1658 = vpop.f32.mrf.mxu0
    %v1659 = vadd.f32 0.0, %v1658
    %1660 = vdwg.mxu0
    %v1661 = vadd.f32 %v1379, %v1586
    %v1662 = vadd.f32 %v1381, %v1588
    %v1663 = vadd.f32 %v1450, %v1657
    %v1664 = vadd.f32 %v1452, %v1659
    %v1665 = vld [vmem:[%s14] sm:$0xf]
    %v1667 = vlaneseq
    %v1668 = vshrl.u32 %v1667, 7
    %v1669 = vsub.s32 0, %v1668
    %v1670 = vrot.slane %v1665, %v1669
    %v1671 = vlaneseq
    %v1672 = vshrl.u32 %v1671, 7
    %v1673 = vsub.s32 1, %v1672
    %v1674 = vrot.slane %v1665, %v1673
    %v1675 = vlaneseq
    %v1676 = vshrl.u32 %v1675, 7
    %v1677 = vsub.s32 2, %v1676
    %v1678 = vrot.slane %v1665, %v1677
    %v1679 = vlaneseq
    %v1680 = vshrl.u32 %v1679, 7
    %v1681 = vsub.s32 3, %v1680
    %v1682 = vrot.slane %v1665, %v1681
    %v1687 = vadd.f32 %v1661, %v1670
    %v1688 = vadd.f32 %v1662, %v1674
    %v1689 = vadd.f32 %v1663, %v1678
    %v1690 = vadd.f32 %v1664, %v1682
    %v1691 = vxor.u32 %v1687, 2147483648
    %v1692 = vmul.f32 %v1691, 1.442695
    %v1693 = vpow.pop %v1692
    %v1694 = vadd.f32 %v1693, 1.0
    %v1695 = vrcp.pop %v1694
    %v1696 = vmul.f32 1.0, %v1695
    %v1697 = vxor.u32 %v1688, 2147483648
    %v1698 = vmul.f32 %v1697, 1.442695
    %v1699 = vpow.pop %v1698
    %v1700 = vadd.f32 %v1699, 1.0
    %v1701 = vrcp.pop %v1700
    %v1702 = vmul.f32 1.0, %v1701
    %v1703 = vtanh.pop %v1689
    %v1704 = vxor.u32 %v1690, 2147483648
    %v1705 = vmul.f32 %v1704, 1.442695
    %v1706 = vpow.pop %v1705
    %v1707 = vadd.f32 %v1706, 1.0
    %v1708 = vrcp.pop %v1707
    %v1709 = vmul.f32 1.0, %v1708
    %v1710 = vld [vmem:[%s6] sm:$0xff]
    %v1711 = vmul.f32 %v1702, %v1710
    %v1712 = vmul.f32 %v1696, %v1703
    %v1713 = vadd.f32 %v1711, %v1712
    %v1714 = vtanh.pop %v1713
    %v1715 = vmul.f32 %v1709, %v1714
    %1716 = vst [vmem:[#allocation20] sm:$0xff] %v1715
    %1717 = vst [vmem:[#allocation22] sm:$0xff] %v1713
    %v1718 = vld [vmem:[#allocation14] sm:$0xff]
    %v1719 = vld [vmem:[#allocation14 + $0x8] sm:$0xff]
    %v1720 = vld [vmem:[#allocation14 + $0x10] sm:$0xff]
    %v1721 = vld [vmem:[#allocation14 + $0x18] sm:$0xff]
    %v1722 = vld [vmem:[#allocation14 + $0x20] sm:$0xff]
    %v1723 = vld [vmem:[#allocation14 + $0x28] sm:$0xff]
    %v1724 = vld [vmem:[#allocation14 + $0x30] sm:$0xff]
    %v1725 = vld [vmem:[#allocation14 + $0x38] sm:$0xff]
    %v1726 = vld [vmem:[#allocation14 + $0x40] sm:$0xff]
    %v1727 = vld [vmem:[#allocation14 + $0x48] sm:$0xff]
    %v1728 = vld [vmem:[#allocation14 + $0x50] sm:$0xff]
    %v1729 = vld [vmem:[#allocation14 + $0x58] sm:$0xff]
    %v1730 = vld [vmem:[#allocation14 + $0x60] sm:$0xff]
    %v1731 = vld [vmem:[#allocation14 + $0x68] sm:$0xff]
    %v1732 = vld [vmem:[#allocation14 + $0x70] sm:$0xff]
    %v1733 = vld [vmem:[#allocation14 + $0x78] sm:$0xff]
    %1734 = vmatprep.subr.mxu0 0.0
    %1735 = vmatpush1.msra.mxu0 %v1733
    %1736 = vmatprep.subr.mxu0 0.0
    %1737 = vmatpush1.msra.mxu0 %v1732
    %1738 = vmatprep.subr.mxu0 0.0
    %1739 = vmatpush1.msra.mxu0 %v1731
    %1740 = vmatprep.subr.mxu0 0.0
    %1741 = vmatpush1.msra.mxu0 %v1730
    %1742 = vmatprep.subr.mxu0 0.0
    %1743 = vmatpush1.msra.mxu0 %v1729
    %1744 = vmatprep.subr.mxu0 0.0
    %1745 = vmatpush1.msra.mxu0 %v1728
    %1746 = vmatprep.subr.mxu0 0.0
    %1747 = vmatpush1.msra.mxu0 %v1727
    %1748 = vmatprep.subr.mxu0 0.0
    %1749 = vmatpush1.msra.mxu0 %v1726
    %1750 = vmatprep.subr.mxu0 0.0
    %1751 = vmatpush1.msra.mxu0 %v1725
    %1752 = vmatprep.subr.mxu0 0.0
    %1753 = vmatpush1.msra.mxu0 %v1724
    %1754 = vmatprep.subr.mxu0 0.0
    %1755 = vmatpush1.msra.mxu0 %v1723
    %1756 = vmatprep.subr.mxu0 0.0
    %1757 = vmatpush1.msra.mxu0 %v1722
    %1758 = vmatprep.subr.mxu0 0.0
    %1759 = vmatpush1.msra.mxu0 %v1721
    %1760 = vmatprep.subr.mxu0 0.0
    %1761 = vmatpush1.msra.mxu0 %v1720
    %1762 = vmatprep.subr.mxu0 0.0
    %1763 = vmatpush1.msra.mxu0 %v1719
    %1764 = vmatprep.subr.mxu0 0.0
    %1765 = vmatpush1.msra.mxu0 %v1718
    %1766 = vmatprep.subr.mxu0 0.0
    %1767 = vmatpush2.msra.mxu0 0.0
    %1768 = vmatprep.subr.mxu0 0.0
    %1769 = vmatpush2.msra.mxu0 0.0
    %1770 = vmatprep.subr.mxu0 0.0
    %1771 = vmatpush2.msra.mxu0 0.0
    %1772 = vmatprep.subr.mxu0 0.0
    %1773 = vmatpush2.msra.mxu0 0.0
    %1774 = vmatprep.subr.mxu0 0.0
    %1775 = vmatpush2.msra.mxu0 0.0
    %1776 = vmatprep.subr.mxu0 0.0
    %1777 = vmatpush2.msra.mxu0 0.0
    %1778 = vmatprep.subr.mxu0 0.0
    %1779 = vmatpush2.msra.mxu0 0.0
    %1780 = vmatprep.subr.mxu0 0.0
    %1781 = vmatpush2.msra.mxu0 0.0
    %1782 = vmatprep.subr.mxu0 0.0
    %1783 = vmatpush2.msra.mxu0 0.0
    %1784 = vmatprep.subr.mxu0 0.0
    %1785 = vmatpush2.msra.mxu0 0.0
    %1786 = vmatprep.subr.mxu0 0.0
    %1787 = vmatpush2.msra.mxu0 0.0
    %1788 = vmatprep.subr.mxu0 0.0
    %1789 = vmatpush2.msra.mxu0 0.0
    %1790 = vmatprep.subr.mxu0 0.0
    %1791 = vmatpush2.msra.mxu0 0.0
    %1792 = vmatprep.subr.mxu0 0.0
    %1793 = vmatpush2.msra.mxu0 0.0
    %1794 = vmatprep.subr.mxu0 0.0
    %1795 = vmatpush2.msra.mxu0 0.0
    %1796 = vmatprep.subr.mxu0 0.0
    %1797 = vmatpush2.msra.mxu0 0.0
    %1798 = vmatprep.mubr.f32.mxu0 0.0
    %1799 = vmatmul.mubr.f32.gmra.mxu0 %v1040
    %v1800 = vpop.f32.mrf.mxu0
    %v1801 = vadd.f32 0.0, %v1800
    %v1802 = vpop.f32.mrf.mxu0
    %1803 = vdwg.mxu0
    %1804 = vst [vmem:[#allocation23] sm:$0xff] %v1801
    // Predicated region
    $region110: #{step.1} parent=1 // pred_check
      _
    $region111: #{step.1} parent=1 // pred_check_branch
      %1806 = sbr.rel (0) target = $region113
    $region112: #{step.1} parent=1 // pred_region
      %s1808 = ssub.s32 128, 128
      %1809 = vsyncadd [#allocation4], %s1808
      %s1811 = sshll.u32 [#allocation16], 4
      %s1812 = int_to_ptr.vmem [resolvable:$true] %s1811
      %1814 = dma.vmem_to_hbm [thread:$0]  %s1812, 128, %s19, [#allocation4]
    $region113: #{step.1} parent=1 // pred_fallthru
      _
    // Predicated region
    $region114: #{step.1} parent=1 // pred_check
      _
    $region115: #{step.1} parent=1 // pred_check_branch
      %1816 = sbr.rel (0) target = $region117
    $region116: #{step.1} parent=1 // pred_region
      %s1818 = ssub.s32 128, 128
      %1819 = vsyncadd [#allocation18], %s1818
      %s1821 = sshll.u32 [#allocation17], 4
      %s1822 = int_to_ptr.vmem [resolvable:$true] %s1821
      %1824 = dma.vmem_to_hbm [thread:$0]  %s1822, 128, %s20, [#allocation18]
    $region117: #{step.1} parent=1 // pred_fallthru
      _
    // Predicated region
    $region118: #{step.1} parent=1 // pred_check
      _
    $region119: #{step.1} parent=1 // pred_check_branch
      %1826 = sbr.rel (0) target = $region121
    $region120: #{step.1} parent=1 // pred_region
      %s1828 = ssub.s32 128, 128
      %1829 = vsyncadd [#allocation18], %s1828
      %s1831 = sshll.u32 [#allocation19], 4
      %s1832 = int_to_ptr.vmem [resolvable:$true] %s1831
      %1834 = dma.vmem_to_hbm [thread:$0]  %s1832, 128, %s21, [#allocation18]
    $region121: #{step.1} parent=1 // pred_fallthru
      _
    // Predicated region
    $region122: #{step.1} parent=1 // pred_check
      _
    $region123: #{step.1} parent=1 // pred_check_branch
      %1836 = sbr.rel (0) target = $region125
    $region124: #{step.1} parent=1 // pred_region
      %s1838 = ssub.s32 128, 128
      %1839 = vsyncadd [#allocation21], %s1838
      %s1841 = sshll.u32 [#allocation20], 4
      %s1842 = int_to_ptr.vmem [resolvable:$true] %s1841
      %1844 = dma.vmem_to_hbm [thread:$0]  %s1842, 128, %s22, [#allocation21]
    $region125: #{step.1} parent=1 // pred_fallthru
      _
    // Predicated region
    $region126: #{step.1} parent=1 // pred_check
      _
    $region127: #{step.1} parent=1 // pred_check_branch
      %1846 = sbr.rel (0) target = $region129
    $region128: #{step.1} parent=1 // pred_region
      %s1848 = ssub.s32 128, 128
      %1849 = vsyncadd [#allocation21], %s1848
      %s1851 = sshll.u32 [#allocation22], 4
      %s1852 = int_to_ptr.vmem [resolvable:$true] %s1851
      %1854 = dma.vmem_to_hbm [thread:$0]  %s1852, 128, %s23, [#allocation21]
    $region129: #{step.1} parent=1 // pred_fallthru
      _
    // Predicated region
    $region130: #{step.1} parent=1 // pred_check
      _
    $region131: #{step.1} parent=1 // pred_check_branch
      %1856 = sbr.rel (0) target = $region133
    $region132: #{step.1} parent=1 // pred_region
      %s1858 = ssub.s32 128, 128
      %1859 = vsyncadd [#allocation24], %s1858
      %s1861 = sshll.u32 [#allocation23], 4
      %s1862 = int_to_ptr.vmem [resolvable:$true] %s1861
      %1864 = dma.vmem_to_hbm [thread:$0]  %s1862, 128, %s24, [#allocation24]
    $region133: #{step.1} parent=1 // pred_fallthru
      _
    // Predicated region
    $region134: #{step.1} parent=1 // pred_check
      _
    $region135: #{step.1} parent=1 // pred_check_branch
      %1866 = sbr.rel (0) target = $region137
    $region136: #{step.1} parent=1 // pred_region
      %1867 = dma.done [#allocation4], 128
    $region137: #{step.1} parent=1 // pred_fallthru
      _
    // Predicated region
    $region138: #{step.1} parent=1 // pred_check
      _
    $region139: #{step.1} parent=1 // pred_check_branch
      %1869 = sbr.rel (0) target = $region141
    $region140: #{step.1} parent=1 // pred_region
      %1870 = dma.done [#allocation18], 128
    $region141: #{step.1} parent=1 // pred_fallthru
      _
    // Predicated region
    $region142: #{step.1} parent=1 // pred_check
      _
    $region143: #{step.1} parent=1 // pred_check_branch
      %1872 = sbr.rel (0) target = $region145
    $region144: #{step.1} parent=1 // pred_region
      %1873 = dma.done [#allocation18], 128
    $region145: #{step.1} parent=1 // pred_fallthru
      _
    // Predicated region
    $region146: #{step.1} parent=1 // pred_check
      _
    $region147: #{step.1} parent=1 // pred_check_branch
      %1875 = sbr.rel (0) target = $region149
    $region148: #{step.1} parent=1 // pred_region
      %1876 = dma.done [#allocation21], 128
    $region149: #{step.1} parent=1 // pred_fallthru
      _
    // Predicated region
    $region150: #{step.1} parent=1 // pred_check
      _
    $region151: #{step.1} parent=1 // pred_check_branch
      %1878 = sbr.rel (0) target = $region153
    $region152: #{step.1} parent=1 // pred_region
      %1879 = dma.done [#allocation21], 128
    $region153: #{step.1} parent=1 // pred_fallthru
      _
    // Predicated region
    $region154: #{step.1} parent=1 // pred_check
      _
    $region155: #{step.1} parent=1 // pred_check_branch
      %1881 = sbr.rel (0) target = $region157
    $region156: #{step.1} parent=1 // pred_region
      %1882 = dma.done [#allocation24], 128
    $region157: #{step.1} parent=1 // pred_fallthru
      _
    %1883 = vsyncpa [#allocation3], 1
    %1884 = vsyncpa [#allocation6], 1
    %1885 = vsyncpa [#allocation9], 1
    %1886 = vsyncpa [#allocation12], 1
    %1887 = vsyncpa [#allocation15], 1
    %1888 = vsyncpa [#allocation4], 1
    %1889 = vsyncpa [#allocation18], 1
    %1890 = vsyncpa [#allocation21], 1
    %1891 = vsyncpa [#allocation24], 1

</llo_original>
